<compile_context>
chip_gen: v5e
topology: v5e:2x2
jax: 0.10.0
libtpu: 0.0.40
codegen_flags: <defaults>
</compile_context>

<pallas_src>
import functools

import jax
import jax.numpy as jnp
from jax.experimental import pallas as pl
from jax.experimental.pallas import tpu as pltpu


# ------------------------- slab layouts (static) -------------------------

def _slab_layouts(H, FF, Cout, num_classes):
    """Static row layouts for the f32 bias/LN slab and the bf16 weight slab."""
    vec_rows = {  # name -> (row, width)
        "ln_emb_g": (0, H), "ln_emb_b": (1, H), "b_qkv": (2, 3 * H),
        "bo": (3, H), "ln1_g": (4, H), "ln1_b": (5, H),
        "b_ff1": (6, FF), "b_ff2": (7, H), "ln2_g": (8, H),
        "ln2_b": (9, H), "img_fc_b": (10, H), "cls_b": (11, num_classes),
    }
    n_vec = 12

    def up16(n):  # keep every weight's row start aligned to a bf16 (16,128) tile
        return ((n + 15) // 16) * 16

    w_rows = {}
    r = 0
    for name, (nr, nc) in [
        ("w_qkv", (H, 3 * H)), ("wo", (H, H)), ("w_ff1", (H, FF)),
        ("w_ff2", (FF, H)), ("img_fc_w", (Cout, H)), ("cls_w", (H, num_classes)),
    ]:
        w_rows[name] = (r, nr, nc)
        r += up16(nr)
    return vec_rows, n_vec, w_rows, r


# ------------------------- fused forward kernel -------------------------

def _layernorm(x, g, b, eps=1e-12):
    mu = jnp.mean(x, axis=-1, keepdims=True)
    var = jnp.mean(jnp.square(x - mu), axis=-1, keepdims=True)
    return (x - mu) * jax.lax.rsqrt(var + eps) * g + b


def _mm(x, w):
    # bf16 operands on the MXU, f32 accumulation; elementwise math stays f32.
    return jnp.dot(x.astype(jnp.bfloat16), w.astype(jnp.bfloat16),
                   preferred_element_type=jnp.float32)


def fused_forward_kernel(
    x_ref,        # (1, S, H)     f32   word+pos embeddings for this batch elem
    mask_ref,     # (1, 1, S)     f32   additive mask: 0 keep / -1e9 pad
    patches_ref,  # (1, CKK, HW)  bf16  im2col patches, contraction on sublanes
    vec_ref,      # (12, 128)     f32   bias / LayerNorm slab
    wts_ref,      # (NW, 128)     bf16  packed weight slab
    conv_w_ref,   # (Cout, CKK)   bf16  conv1 weight (flattened OIHW)
    o_ref,        # (1, 1, C)     f32
    *, nh, dh, vec_rows, w_rows,
):
    H = nh * dh
    S = x_ref.shape[1]
    f32 = jnp.float32
    bf16 = jnp.bfloat16

    def vec(name):
        r, w = vec_rows[name]
        return vec_ref[r:r + 1, :w]            # (1, w) f32

    def wt(name):
        r, nr, nc = w_rows[name]
        return wts_ref[r:r + nr, :nc]          # (nr, nc) bf16

    # ---------------- text branch: one BERT-style encoder layer ----------------
    x = x_ref[0]                                                   # (S, H) f32
    h = _layernorm(x, vec("ln_emb_g"), vec("ln_emb_b"))

    # fused QKV projection (single MXU pass), then head-major split via one 2-D
    # transpose + leading-dim reshape (no per-head lane slices, no concat).
    qkv = _mm(h, wt("w_qkv")) + vec("b_qkv")                       # (S, 3H) f32
    qkvT = qkv.T.reshape(3, nh, dh, S)                             # (3, nh, dh, S)
    qT, kT, vT = qkvT[0], qkvT[1], qkvT[2]                         # (nh, dh, S)
    qS = jnp.swapaxes(qT, -1, -2)                                  # (nh, S, dh)

    scale = 1.0 / (dh ** 0.5)
    s = jnp.einsum("hid,hdj->hij", qS.astype(bf16), kT.astype(bf16),
                   preferred_element_type=f32) * scale             # (nh, S, S)
    s = s + mask_ref[...]                                          # VPU add (mask)
    s = s - jnp.max(s, axis=-1, keepdims=True)
    p = jnp.exp(s)
    p = p * pl.reciprocal(jnp.sum(p, axis=-1, keepdims=True), approx=True)
    ctxT = jnp.einsum("hdt,hst->hds", vT.astype(bf16), p.astype(bf16),
                      preferred_element_type=f32)                  # (nh, dh, S)

    # head merge = reshape + one 2-D transpose, then a single output projection
    attn = ctxT.reshape(H, S).T                                    # (S, H)
    attn_out = _mm(attn, wt("wo")) + vec("bo")
    h1 = _layernorm(attn_out + h, vec("ln1_g"), vec("ln1_b"))

    # TODO(synk): jax.nn.gelu(approximate=True) vs PyTorch BERT's exact erf GELU;
    # difference is negligible and the weights here are synthetic.
    ff = jax.nn.gelu(_mm(h1, wt("w_ff1")) + vec("b_ff1"), approximate=True)
    ff = _mm(ff, wt("w_ff2")) + vec("b_ff2")
    h2 = _layernorm(ff + h1, vec("ln2_g"), vec("ln2_b"))           # (S, H)
    text_features = h2[0:1, :]                                     # [CLS] -> (1, H)

    # --------- image branch: conv1 (transposed im2col matmul) + ReLU + GAP + fc
    conv = jnp.dot(conv_w_ref[...], patches_ref[0],
                   preferred_element_type=f32)                     # (Cout, HW), bias=False
    conv = jnp.maximum(conv, 0.0)
    pooled = jnp.mean(conv, axis=-1, keepdims=True)                # (Cout, 1) f32 GAP
    image_features = jnp.sum(pooled * wt("img_fc_w").astype(f32),
                             axis=0, keepdims=True) + vec("img_fc_b")   # (1, H)

    # ---------------- combine + classifier ----------------
    combined = text_features + image_features                      # (1, H)
    logits = _mm(combined, wt("cls_w")) + vec("cls_b")             # (1, C)
    o_ref[0] = logits


# ------------------------- one-time parameter prep -------------------------

def init_params(key, *, vocab=100, H=32, S=8, FF=64, Cin=3, Cout=8, num_classes=2):
    ks = jax.random.split(key, 12)

    def nrm(k, shape, scale=0.02):
        return scale * jax.random.normal(k, shape, jnp.float32)

    p = {}
    # text encoder (simplified BERT)
    p["word_emb"] = nrm(ks[0], (vocab, H))
    p["pos_emb"] = nrm(ks[1], (S, H))
    p["ln_emb_g"] = jnp.ones((1, H)); p["ln_emb_b"] = jnp.zeros((1, H))
    p["wq"] = nrm(ks[2], (H, H)); p["bq"] = jnp.zeros((1, H))
    p["wk"] = nrm(ks[3], (H, H)); p["bk"] = jnp.zeros((1, H))
    p["wv"] = nrm(ks[4], (H, H)); p["bv"] = jnp.zeros((1, H))
    p["wo"] = nrm(ks[5], (H, H)); p["bo"] = jnp.zeros((1, H))
    p["ln1_g"] = jnp.ones((1, H)); p["ln1_b"] = jnp.zeros((1, H))
    p["w_ff1"] = nrm(ks[6], (H, FF)); p["b_ff1"] = jnp.zeros((1, FF))
    p["w_ff2"] = nrm(ks[7], (FF, H)); p["b_ff2"] = jnp.zeros((1, H))
    p["ln2_g"] = jnp.ones((1, H)); p["ln2_b"] = jnp.zeros((1, H))
    # image encoder (resnet conv1 stem, bias=False, OIHW like PyTorch) + fc
    p["conv1_w"] = nrm(ks[8], (Cout, Cin, 7, 7))
    p["img_fc_w"] = nrm(ks[9], (Cout, H)); p["img_fc_b"] = jnp.zeros((1, H))
    # classifier (768->num_classes in the original, H->num_classes here)
    p["cls_w"] = nrm(ks[10], (H, num_classes)); p["cls_b"] = jnp.zeros((1, num_classes))
    return p


def prepare_params(params):
    """One-time prep: fuse QKV, pack slabs, pre-cast to bf16 (hoisted out of forward)."""
    H = params["wq"].shape[0]
    FF = params["w_ff1"].shape[1]
    Cout = params["conv1_w"].shape[0]
    num_classes = params["cls_w"].shape[1]
    assert 3 * H <= 128, "slab packing assumes 3*H fits in one 128-lane row"
    vec_rows, n_vec, w_rows, n_w = _slab_layouts(H, FF, Cout, num_classes)

    w_qkv = jnp.concatenate([params["wq"], params["wk"], params["wv"]], axis=1)
    b_qkv = jnp.concatenate([params["bq"], params["bk"], params["bv"]], axis=1)

    vec_vals = {
        "ln_emb_g": params["ln_emb_g"], "ln_emb_b": params["ln_emb_b"],
        "b_qkv": b_qkv, "bo": params["bo"], "ln1_g": params["ln1_g"],
        "ln1_b": params["ln1_b"], "b_ff1": params["b_ff1"],
        "b_ff2": params["b_ff2"], "ln2_g": params["ln2_g"],
        "ln2_b": params["ln2_b"], "img_fc_b": params["img_fc_b"],
        "cls_b": params["cls_b"],
    }
    vec_slab = jnp.zeros((n_vec, 128), jnp.float32)
    for name, (r, w) in vec_rows.items():
        vec_slab = vec_slab.at[r, :w].set(vec_vals[name].reshape(w))

    w_vals = {
        "w_qkv": w_qkv, "wo": params["wo"], "w_ff1": params["w_ff1"],
        "w_ff2": params["w_ff2"], "img_fc_w": params["img_fc_w"],
        "cls_w": params["cls_w"],
    }
    w_slab = jnp.zeros((n_w, 128), jnp.float32)
    for name, (r, nr, nc) in w_rows.items():
        w_slab = w_slab.at[r:r + nr, :nc].set(w_vals[name])
    w_slab = w_slab.astype(jnp.bfloat16)

    conv_w = params["conv1_w"].reshape(Cout, -1).astype(jnp.bfloat16)  # (Cout, C*K*K)

    return {"word_emb": params["word_emb"], "pos_emb": params["pos_emb"],
            "vec": vec_slab, "wts": w_slab, "conv_w": conv_w}


def im2col_nchw_t(image, K=7, stride=2, pad=3):
    """NCHW image -> (B, C*K*K, OH*OW) patches (contraction dim on sublanes),
    feature order (C, kh, kw) matching a PyTorch OIHW weight flattened as
    w.reshape(Cout, -1)."""
    # TODO(synk): at real (224x224) sizes, fold this into the kernel with strided
    # DMA from an HBM-resident padded image instead of wrapper XLA ops.
    B, C, Hh, Ww = image.shape
    OH = (Hh + 2 * pad - K) // stride + 1
    OW = (Ww + 2 * pad - K) // stride + 1
    xp = jnp.pad(image, ((0, 0), (0, 0), (pad, pad), (pad, pad)))
    cols = []
    for ki in range(K):
        for kj in range(K):
            cols.append(xp[:, :, ki:ki + stride * OH:stride, kj:kj + stride * OW:stride])
    patches = jnp.stack(cols, axis=0).reshape(K, K, B, C, OH, OW)
    patches = patches.transpose(2, 3, 0, 1, 4, 5)          # (B, C, K, K, OH, OW)
    return patches.reshape(B, C * K * K, OH * OW), (OH, OW)


# ------------------------- forward (single fused pallas_call) -------------------------

def build_forward(*, nh, H, FF, Cout, num_classes):
    vec_rows, n_vec, w_rows, n_w = _slab_layouts(H, FF, Cout, num_classes)
    dh = H // nh
    kernel = functools.partial(fused_forward_kernel, nh=nh, dh=dh,
                               vec_rows=vec_rows, w_rows=w_rows)

    @jax.jit
    def forward(prep, input_ids, attention_mask, image):
        B, S = input_ids.shape

        # per-call, input-dependent prep only (everything else lives in prepare_params)
        x = prep["word_emb"][input_ids] + prep["pos_emb"][None, :, :]          # (B, S, H)
        x = x.astype(jnp.float32)
        add_mask = jnp.where(attention_mask > 0, 0.0, -1e9).astype(jnp.float32)
        add_mask = add_mask[:, None, :]                                        # (B, 1, S)
        patches, (OH, OW) = im2col_nchw_t(image, K=7, stride=2, pad=3)
        patches = patches.astype(jnp.bfloat16)                                 # (B, CKK, HW)
        CKK, HW = patches.shape[1], patches.shape[2]

        # Grid over batch (parallel -> both v7x TensorCores get work); weights are
        # full-block VMEM-resident so they are not re-DMA'd across grid steps.
        # TODO(synk): at real sizes (hidden=768, 12 layers, resnet50 @ 224x224) add
        # row tiling over B*S / B*HW with BlockSpecs sized for v7x's 64 MiB VMEM and
        # set vmem_limit_bytes explicitly.
        out = pl.pallas_call(
            kernel,
            grid=(B,),
            in_specs=[
                pl.BlockSpec((1, S, H), lambda b: (b, 0, 0)),
                pl.BlockSpec((1, 1, S), lambda b: (b, 0, 0)),
                pl.BlockSpec((1, CKK, HW), lambda b: (b, 0, 0)),
                pl.BlockSpec((n_vec, 128), lambda b: (0, 0)),
                pl.BlockSpec((n_w, 128), lambda b: (0, 0)),
                pl.BlockSpec((Cout, CKK), lambda b: (0, 0)),
            ],
            out_specs=pl.BlockSpec((1, 1, num_classes), lambda b: (b, 0, 0)),
            out_shape=jax.ShapeDtypeStruct((B, 1, num_classes), jnp.float32),
            compiler_params=pltpu.CompilerParams(
                dimension_semantics=("parallel",)),
        )(x, add_mask, patches, prep["vec"], prep["wts"], prep["conv_w"])
        return out.reshape(B, num_classes)

    return forward


# ------------------------- main -------------------------

if __name__ == "__main__":
    B, S, H, FF, nh = 2, 8, 32, 64, 4
    Cin, Cout, num_classes = 3, 8, 2

    key = jax.random.PRNGKey(0)
    k_param, k_ids, k_img = jax.random.split(key, 3)

    params = init_params(k_param, vocab=100, H=H, S=S, FF=FF, Cin=Cin,
                         Cout=Cout, num_classes=num_classes)
    prep = prepare_params(params)                       # one-time, hoisted prep
    forward = build_forward(nh=nh, H=H, FF=FF, Cout=Cout, num_classes=num_classes)

    input_ids = jax.random.randint(k_ids, (B, S), 0, 100, dtype=jnp.int32)
    attention_mask = jnp.ones((B, S), dtype=jnp.int32).at[1, -2:].set(0)
    image = jax.random.normal(k_img, (B, Cin, 16, 16), dtype=jnp.float32)

    out = forward(prep, input_ids, attention_mask, image)
    out = jax.block_until_ready(out)
    assert out.shape == (B, num_classes) and out.dtype == jnp.float32
    print("KERNEL_OK")
</pallas_src>

<mosaic_0001>
module attributes {stable_mosaic.version = 11 : i64} {
  func.func @fused_forward_kernel(%arg0: i32, %arg1: memref<1x8x32xf32, #tpu.memory_space<vmem>>, %arg2: memref<1x1x8xf32, #tpu.memory_space<vmem>>, %arg3: memref<1x147x64xbf16, #tpu.memory_space<vmem>>, %arg4: memref<12x128xf32, #tpu.memory_space<vmem>>, %arg5: memref<208x128xbf16, #tpu.memory_space<vmem>>, %arg6: memref<8x147xbf16, #tpu.memory_space<vmem>>, %arg7: memref<1x1x2xf32, #tpu.memory_space<vmem>>) attributes {dimension_semantics = [#tpu.dimension_semantics<parallel>], iteration_bounds = array<i64: 2>, scalar_prefetch = 0 : i64, scratch_operands = 0 : i64, tpu.core_type = #tpu.core_type<tc>, window_params = [{transform_indices = @transform_0, window_bounds = array<i64: 1, 8, 32>}, {transform_indices = @transform_1, window_bounds = array<i64: 1, 1, 8>}, {transform_indices = @transform_2, window_bounds = array<i64: 1, 147, 64>}, {pipeline_mode = #tpu.pipeline_mode<synchronous>, transform_indices = @transform_3, window_bounds = array<i64: 12, 128>}, {pipeline_mode = #tpu.pipeline_mode<synchronous>, transform_indices = @transform_4, window_bounds = array<i64: 208, 128>}, {pipeline_mode = #tpu.pipeline_mode<synchronous>, transform_indices = @transform_5, window_bounds = array<i64: 8, 147>}, {transform_indices = @transform_6, window_bounds = array<i64: 1, 1, 2>}]} {
    %c0 = arith.constant 0 : index
    %c0_0 = arith.constant 0 : index
    %c0_1 = arith.constant 0 : index
    %0 = vector.load %arg1[%c0, %c0_0, %c0_1] : memref<1x8x32xf32, #tpu.memory_space<vmem>>, vector<1x8x32xf32>
    %1 = vector.shape_cast %0 : vector<1x8x32xf32> to vector<8x32xf32>
    %c0_2 = arith.constant 0 : index
    %c0_3 = arith.constant 0 : index
    %2 = vector.load %arg4[%c0_2, %c0_3] : memref<12x128xf32, #tpu.memory_space<vmem>>, vector<1x32xf32>
    %c1 = arith.constant 1 : index
    %c0_4 = arith.constant 0 : index
    %3 = vector.load %arg4[%c1, %c0_4] : memref<12x128xf32, #tpu.memory_space<vmem>>, vector<1x32xf32>
    %cst = arith.constant dense<0.000000e+00> : vector<8xf32>
    %4 = vector.multi_reduction <add>, %1, %cst [1] : vector<8x32xf32> to vector<8xf32>
    %5 = vector.shape_cast %4 : vector<8xf32> to vector<8x1xf32>
    %cst_5 = arith.constant 3.200000e+01 : f32
    %6 = vector.broadcast %cst_5 : f32 to vector<8x1xf32>
    %7 = arith.divf %5, %6 : vector<8x1xf32>
    %8 = vector.broadcast %7 : vector<8x1xf32> to vector<8x32xf32>
    %9 = arith.subf %1, %8 : vector<8x32xf32>
    %10 = arith.mulf %9, %9 : vector<8x32xf32>
    %cst_6 = arith.constant dense<0.000000e+00> : vector<8xf32>
    %11 = vector.multi_reduction <add>, %10, %cst_6 [1] : vector<8x32xf32> to vector<8xf32>
    %12 = vector.shape_cast %11 : vector<8xf32> to vector<8x1xf32>
    %cst_7 = arith.constant 3.200000e+01 : f32
    %13 = vector.broadcast %cst_7 : f32 to vector<8x1xf32>
    %14 = arith.divf %12, %13 : vector<8x1xf32>
    %15 = vector.broadcast %7 : vector<8x1xf32> to vector<8x32xf32>
    %16 = arith.subf %1, %15 : vector<8x32xf32>
    %cst_8 = arith.constant 9.99999996E-13 : f32
    %17 = vector.broadcast %cst_8 : f32 to vector<8x1xf32>
    %18 = arith.addf %14, %17 : vector<8x1xf32>
    %19 = math.rsqrt %18 : vector<8x1xf32>
    %20 = vector.broadcast %19 : vector<8x1xf32> to vector<8x32xf32>
    %21 = arith.mulf %16, %20 : vector<8x32xf32>
    %22 = vector.broadcast %2 : vector<1x32xf32> to vector<8x32xf32>
    %23 = arith.mulf %21, %22 : vector<8x32xf32>
    %24 = vector.broadcast %3 : vector<1x32xf32> to vector<8x32xf32>
    %25 = arith.addf %23, %24 : vector<8x32xf32>
    %c0_9 = arith.constant 0 : index
    %c0_10 = arith.constant 0 : index
    %26 = vector.load %arg5[%c0_9, %c0_10] : memref<208x128xbf16, #tpu.memory_space<vmem>>, vector<32x96xbf16>
    %27 = arith.truncf %25 : vector<8x32xf32> to vector<8x32xbf16>
    %cst_11 = arith.constant dense<0.000000e+00> : vector<8x96xf32>
    %28 = tpu.matmul %27, %26, %cst_11 {dimension_numbers = #tpu.dot_dimension_numbers<[1], [0], [0], [1], [0, 0, 1, 1], [], []>} : vector<8x32xbf16>, vector<32x96xbf16>, vector<8x96xf32> -> vector<8x96xf32>
    %c2 = arith.constant 2 : index
    %c0_12 = arith.constant 0 : index
    %29 = vector.load %arg4[%c2, %c0_12] : memref<12x128xf32, #tpu.memory_space<vmem>>, vector<1x96xf32>
    %30 = vector.broadcast %29 : vector<1x96xf32> to vector<8x96xf32>
    %31 = arith.addf %28, %30 : vector<8x96xf32>
    %32 = tpu.transpose %31, [1, 0] : vector<8x96xf32> -> vector<96x8xf32>
    %33 = vector.shape_cast %32 : vector<96x8xf32> to vector<3x4x8x8xf32>
    %34 = vector.extract_strided_slice %33 {offsets = [0, 0, 0, 0], sizes = [1, 4, 8, 8], strides = [1, 1, 1, 1]} : vector<3x4x8x8xf32> to vector<1x4x8x8xf32>
    %35 = vector.shape_cast %34 : vector<1x4x8x8xf32> to vector<4x8x8xf32>
    %36 = vector.extract_strided_slice %33 {offsets = [1, 0, 0, 0], sizes = [1, 4, 8, 8], strides = [1, 1, 1, 1]} : vector<3x4x8x8xf32> to vector<1x4x8x8xf32>
    %37 = vector.shape_cast %36 : vector<1x4x8x8xf32> to vector<4x8x8xf32>
    %38 = vector.extract_strided_slice %33 {offsets = [2, 0, 0, 0], sizes = [1, 4, 8, 8], strides = [1, 1, 1, 1]} : vector<3x4x8x8xf32> to vector<1x4x8x8xf32>
    %39 = vector.shape_cast %38 : vector<1x4x8x8xf32> to vector<4x8x8xf32>
    %40 = tpu.transpose %35, [0, 2, 1] : vector<4x8x8xf32> -> vector<4x8x8xf32>
    %41 = arith.truncf %40 : vector<4x8x8xf32> to vector<4x8x8xbf16>
    %42 = arith.truncf %37 : vector<4x8x8xf32> to vector<4x8x8xbf16>
    "tpu.trace_start"() <{level = 10 : i32, message = "hid,hdj->hij"}> : () -> ()
    %cst_13 = arith.constant dense<0.000000e+00> : vector<4x8x8xf32>
    %43 = tpu.matmul %41, %42, %cst_13 {dimension_numbers = #tpu.dot_dimension_numbers<[2], [1], [1], [2], [0, 0, 0, 1, 1, 2], [0], [0]>} : vector<4x8x8xbf16>, vector<4x8x8xbf16>, vector<4x8x8xf32> -> vector<4x8x8xf32>
    "tpu.trace_stop"() : () -> ()
    %cst_14 = arith.constant 0.353553385 : f32
    %44 = vector.broadcast %cst_14 : f32 to vector<4x8x8xf32>
    %45 = arith.mulf %43, %44 : vector<4x8x8xf32>
    %c0_15 = arith.constant 0 : index
    %c0_16 = arith.constant 0 : index
    %c0_17 = arith.constant 0 : index
    %46 = vector.load %arg2[%c0_15, %c0_16, %c0_17] : memref<1x1x8xf32, #tpu.memory_space<vmem>>, vector<1x1x8xf32>
    %47 = vector.broadcast %46 : vector<1x1x8xf32> to vector<4x8x8xf32>
    %48 = arith.addf %45, %47 : vector<4x8x8xf32>
    %cst_18 = arith.constant dense<0xFF800000> : vector<4x8xf32>
    %49 = vector.multi_reduction <maximumf>, %48, %cst_18 [2] : vector<4x8x8xf32> to vector<4x8xf32>
    %50 = vector.shape_cast %49 : vector<4x8xf32> to vector<4x8x1xf32>
    %51 = vector.broadcast %50 : vector<4x8x1xf32> to vector<4x8x8xf32>
    %52 = arith.subf %48, %51 : vector<4x8x8xf32>
    %53 = math.exp %52 : vector<4x8x8xf32>
    %cst_19 = arith.constant dense<0.000000e+00> : vector<4x8xf32>
    %54 = vector.multi_reduction <add>, %53, %cst_19 [2] : vector<4x8x8xf32> to vector<4x8xf32>
    %55 = vector.shape_cast %54 : vector<4x8xf32> to vector<4x8x1xf32>
    %56 = tpu.reciprocal %55 {approx = true} : vector<4x8x1xf32> -> vector<4x8x1xf32>
    %57 = vector.broadcast %56 : vector<4x8x1xf32> to vector<4x8x8xf32>
    %58 = arith.mulf %53, %57 : vector<4x8x8xf32>
    %59 = arith.truncf %39 : vector<4x8x8xf32> to vector<4x8x8xbf16>
    %60 = arith.truncf %58 : vector<4x8x8xf32> to vector<4x8x8xbf16>
    "tpu.trace_start"() <{level = 10 : i32, message = "hdt,hst->hds"}> : () -> ()
    %cst_20 = arith.constant dense<0.000000e+00> : vector<4x8x8xf32>
    %61 = tpu.matmul %59, %60, %cst_20 {dimension_numbers = #tpu.dot_dimension_numbers<[2], [2], [1], [1], [0, 0, 0, 1, 1, 1], [0], [0]>} : vector<4x8x8xbf16>, vector<4x8x8xbf16>, vector<4x8x8xf32> -> vector<4x8x8xf32>
    "tpu.trace_stop"() : () -> ()
    %62 = vector.shape_cast %61 : vector<4x8x8xf32> to vector<32x8xf32>
    %63 = tpu.transpose %62, [1, 0] : vector<32x8xf32> -> vector<8x32xf32>
    %c32 = arith.constant 32 : index
    %c0_21 = arith.constant 0 : index
    %64 = vector.load %arg5[%c32, %c0_21] : memref<208x128xbf16, #tpu.memory_space<vmem>>, vector<32x32xbf16>
    %65 = arith.truncf %63 : vector<8x32xf32> to vector<8x32xbf16>
    %cst_22 = arith.constant dense<0.000000e+00> : vector<8x32xf32>
    %66 = tpu.matmul %65, %64, %cst_22 {dimension_numbers = #tpu.dot_dimension_numbers<[1], [0], [0], [1], [0, 0, 1, 1], [], []>} : vector<8x32xbf16>, vector<32x32xbf16>, vector<8x32xf32> -> vector<8x32xf32>
    %c3 = arith.constant 3 : index
    %c0_23 = arith.constant 0 : index
    %67 = vector.load %arg4[%c3, %c0_23] : memref<12x128xf32, #tpu.memory_space<vmem>>, vector<1x32xf32>
    %68 = vector.broadcast %67 : vector<1x32xf32> to vector<8x32xf32>
    %69 = arith.addf %66, %68 : vector<8x32xf32>
    %70 = arith.addf %69, %25 : vector<8x32xf32>
    %c4 = arith.constant 4 : index
    %c0_24 = arith.constant 0 : index
    %71 = vector.load %arg4[%c4, %c0_24] : memref<12x128xf32, #tpu.memory_space<vmem>>, vector<1x32xf32>
    %c5 = arith.constant 5 : index
    %c0_25 = arith.constant 0 : index
    %72 = vector.load %arg4[%c5, %c0_25] : memref<12x128xf32, #tpu.memory_space<vmem>>, vector<1x32xf32>
    %cst_26 = arith.constant dense<0.000000e+00> : vector<8xf32>
    %73 = vector.multi_reduction <add>, %70, %cst_26 [1] : vector<8x32xf32> to vector<8xf32>
    %74 = vector.shape_cast %73 : vector<8xf32> to vector<8x1xf32>
    %cst_27 = arith.constant 3.200000e+01 : f32
    %75 = vector.broadcast %cst_27 : f32 to vector<8x1xf32>
    %76 = arith.divf %74, %75 : vector<8x1xf32>
    %77 = vector.broadcast %76 : vector<8x1xf32> to vector<8x32xf32>
    %78 = arith.subf %70, %77 : vector<8x32xf32>
    %79 = arith.mulf %78, %78 : vector<8x32xf32>
    %cst_28 = arith.constant dense<0.000000e+00> : vector<8xf32>
    %80 = vector.multi_reduction <add>, %79, %cst_28 [1] : vector<8x32xf32> to vector<8xf32>
    %81 = vector.shape_cast %80 : vector<8xf32> to vector<8x1xf32>
    %cst_29 = arith.constant 3.200000e+01 : f32
    %82 = vector.broadcast %cst_29 : f32 to vector<8x1xf32>
    %83 = arith.divf %81, %82 : vector<8x1xf32>
    %84 = vector.broadcast %76 : vector<8x1xf32> to vector<8x32xf32>
    %85 = arith.subf %70, %84 : vector<8x32xf32>
    %cst_30 = arith.constant 9.99999996E-13 : f32
    %86 = vector.broadcast %cst_30 : f32 to vector<8x1xf32>
    %87 = arith.addf %83, %86 : vector<8x1xf32>
    %88 = math.rsqrt %87 : vector<8x1xf32>
    %89 = vector.broadcast %88 : vector<8x1xf32> to vector<8x32xf32>
    %90 = arith.mulf %85, %89 : vector<8x32xf32>
    %91 = vector.broadcast %71 : vector<1x32xf32> to vector<8x32xf32>
    %92 = arith.mulf %90, %91 : vector<8x32xf32>
    %93 = vector.broadcast %72 : vector<1x32xf32> to vector<8x32xf32>
    %94 = arith.addf %92, %93 : vector<8x32xf32>
    %c64 = arith.constant 64 : index
    %c0_31 = arith.constant 0 : index
    %95 = vector.load %arg5[%c64, %c0_31] : memref<208x128xbf16, #tpu.memory_space<vmem>>, vector<32x64xbf16>
    %96 = arith.truncf %94 : vector<8x32xf32> to vector<8x32xbf16>
    %cst_32 = arith.constant dense<0.000000e+00> : vector<8x64xf32>
    %97 = tpu.matmul %96, %95, %cst_32 {dimension_numbers = #tpu.dot_dimension_numbers<[1], [0], [0], [1], [0, 0, 1, 1], [], []>} : vector<8x32xbf16>, vector<32x64xbf16>, vector<8x64xf32> -> vector<8x64xf32>
    %c6 = arith.constant 6 : index
    %c0_33 = arith.constant 0 : index
    %98 = vector.load %arg4[%c6, %c0_33] : memref<12x128xf32, #tpu.memory_space<vmem>>, vector<1x64xf32>
    %99 = vector.broadcast %98 : vector<1x64xf32> to vector<8x64xf32>
    %100 = arith.addf %97, %99 : vector<8x64xf32>
    %101 = arith.mulf %100, %100 : vector<8x64xf32>
    %102 = arith.mulf %100, %101 : vector<8x64xf32>
    %cst_34 = arith.constant 4.471500e-02 : f32
    %103 = vector.broadcast %cst_34 : f32 to vector<8x64xf32>
    %104 = arith.mulf %103, %102 : vector<8x64xf32>
    %105 = arith.addf %100, %104 : vector<8x64xf32>
    %cst_35 = arith.constant 0.797884583 : f32
    %106 = vector.broadcast %cst_35 : f32 to vector<8x64xf32>
    %107 = arith.mulf %106, %105 : vector<8x64xf32>
    %108 = math.tanh %107 : vector<8x64xf32>
    %cst_36 = arith.constant 1.000000e+00 : f32
    %109 = vector.broadcast %cst_36 : f32 to vector<8x64xf32>
    %110 = arith.addf %109, %108 : vector<8x64xf32>
    %cst_37 = arith.constant 5.000000e-01 : f32
    %111 = vector.broadcast %cst_37 : f32 to vector<8x64xf32>
    %112 = arith.mulf %111, %110 : vector<8x64xf32>
    %113 = arith.mulf %100, %112 : vector<8x64xf32>
    %c96 = arith.constant 96 : index
    %c0_38 = arith.constant 0 : index
    %114 = vector.load %arg5[%c96, %c0_38] : memref<208x128xbf16, #tpu.memory_space<vmem>>, vector<64x32xbf16>
    %115 = arith.truncf %113 : vector<8x64xf32> to vector<8x64xbf16>
    %cst_39 = arith.constant dense<0.000000e+00> : vector<8x32xf32>
    %116 = tpu.matmul %115, %114, %cst_39 {dimension_numbers = #tpu.dot_dimension_numbers<[1], [0], [0], [1], [0, 0, 1, 1], [], []>} : vector<8x64xbf16>, vector<64x32xbf16>, vector<8x32xf32> -> vector<8x32xf32>
    %c7 = arith.constant 7 : index
    %c0_40 = arith.constant 0 : index
    %117 = vector.load %arg4[%c7, %c0_40] : memref<12x128xf32, #tpu.memory_space<vmem>>, vector<1x32xf32>
    %118 = vector.broadcast %117 : vector<1x32xf32> to vector<8x32xf32>
    %119 = arith.addf %116, %118 : vector<8x32xf32>
    %120 = arith.addf %119, %94 : vector<8x32xf32>
    %c8 = arith.constant 8 : index
    %c0_41 = arith.constant 0 : index
    %121 = vector.load %arg4[%c8, %c0_41] : memref<12x128xf32, #tpu.memory_space<vmem>>, vector<1x32xf32>
    %c9 = arith.constant 9 : index
    %c0_42 = arith.constant 0 : index
    %122 = vector.load %arg4[%c9, %c0_42] : memref<12x128xf32, #tpu.memory_space<vmem>>, vector<1x32xf32>
    %cst_43 = arith.constant dense<0.000000e+00> : vector<8xf32>
    %123 = vector.multi_reduction <add>, %120, %cst_43 [1] : vector<8x32xf32> to vector<8xf32>
    %124 = vector.shape_cast %123 : vector<8xf32> to vector<8x1xf32>
    %cst_44 = arith.constant 3.200000e+01 : f32
    %125 = vector.broadcast %cst_44 : f32 to vector<8x1xf32>
    %126 = arith.divf %124, %125 : vector<8x1xf32>
    %127 = vector.broadcast %126 : vector<8x1xf32> to vector<8x32xf32>
    %128 = arith.subf %120, %127 : vector<8x32xf32>
    %129 = arith.mulf %128, %128 : vector<8x32xf32>
    %cst_45 = arith.constant dense<0.000000e+00> : vector<8xf32>
    %130 = vector.multi_reduction <add>, %129, %cst_45 [1] : vector<8x32xf32> to vector<8xf32>
    %131 = vector.shape_cast %130 : vector<8xf32> to vector<8x1xf32>
    %cst_46 = arith.constant 3.200000e+01 : f32
    %132 = vector.broadcast %cst_46 : f32 to vector<8x1xf32>
    %133 = arith.divf %131, %132 : vector<8x1xf32>
    %134 = vector.broadcast %126 : vector<8x1xf32> to vector<8x32xf32>
    %135 = arith.subf %120, %134 : vector<8x32xf32>
    %cst_47 = arith.constant 9.99999996E-13 : f32
    %136 = vector.broadcast %cst_47 : f32 to vector<8x1xf32>
    %137 = arith.addf %133, %136 : vector<8x1xf32>
    %138 = math.rsqrt %137 : vector<8x1xf32>
    %139 = vector.broadcast %138 : vector<8x1xf32> to vector<8x32xf32>
    %140 = arith.mulf %135, %139 : vector<8x32xf32>
    %141 = vector.broadcast %121 : vector<1x32xf32> to vector<8x32xf32>
    %142 = arith.mulf %140, %141 : vector<8x32xf32>
    %143 = vector.broadcast %122 : vector<1x32xf32> to vector<8x32xf32>
    %144 = arith.addf %142, %143 : vector<8x32xf32>
    %145 = vector.extract_strided_slice %144 {offsets = [0, 0], sizes = [1, 32], strides = [1, 1]} : vector<8x32xf32> to vector<1x32xf32>
    %c0_48 = arith.constant 0 : index
    %c0_49 = arith.constant 0 : index
    %146 = vector.load %arg6[%c0_48, %c0_49] : memref<8x147xbf16, #tpu.memory_space<vmem>>, vector<8x147xbf16>
    %c0_50 = arith.constant 0 : index
    %c0_51 = arith.constant 0 : index
    %c0_52 = arith.constant 0 : index
    %147 = vector.load %arg3[%c0_50, %c0_51, %c0_52] : memref<1x147x64xbf16, #tpu.memory_space<vmem>>, vector<1x147x64xbf16>
    %148 = vector.shape_cast %147 : vector<1x147x64xbf16> to vector<147x64xbf16>
    %cst_53 = arith.constant dense<0.000000e+00> : vector<8x64xf32>
    %149 = tpu.matmul %146, %148, %cst_53 {dimension_numbers = #tpu.dot_dimension_numbers<[1], [0], [0], [1], [0, 0, 1, 1], [], []>} : vector<8x147xbf16>, vector<147x64xbf16>, vector<8x64xf32> -> vector<8x64xf32>
    %cst_54 = arith.constant 0.000000e+00 : f32
    %150 = vector.broadcast %cst_54 : f32 to vector<8x64xf32>
    %151 = arith.maximumf %149, %150 : vector<8x64xf32>
    %cst_55 = arith.constant dense<0.000000e+00> : vector<8xf32>
    %152 = vector.multi_reduction <add>, %151, %cst_55 [1] : vector<8x64xf32> to vector<8xf32>
    %153 = vector.shape_cast %152 : vector<8xf32> to vector<8x1xf32>
    %cst_56 = arith.constant 6.400000e+01 : f32
    %154 = vector.broadcast %cst_56 : f32 to vector<8x1xf32>
    %155 = arith.divf %153, %154 : vector<8x1xf32>
    %c160 = arith.constant 160 : index
    %c0_57 = arith.constant 0 : index
    %156 = vector.load %arg5[%c160, %c0_57] : memref<208x128xbf16, #tpu.memory_space<vmem>>, vector<8x32xbf16>
    %157 = arith.extf %156 : vector<8x32xbf16> to vector<8x32xf32>
    %158 = vector.broadcast %155 : vector<8x1xf32> to vector<8x32xf32>
    %159 = arith.mulf %158, %157 : vector<8x32xf32>
    %cst_58 = arith.constant dense<0.000000e+00> : vector<32xf32>
    %160 = vector.multi_reduction <add>, %159, %cst_58 [0] : vector<8x32xf32> to vector<32xf32>
    %161 = vector.shape_cast %160 : vector<32xf32> to vector<1x32xf32>
    %c10 = arith.constant 10 : index
    %c0_59 = arith.constant 0 : index
    %162 = vector.load %arg4[%c10, %c0_59] : memref<12x128xf32, #tpu.memory_space<vmem>>, vector<1x32xf32>
    %163 = arith.addf %161, %162 : vector<1x32xf32>
    %164 = arith.addf %145, %163 : vector<1x32xf32>
    %c176 = arith.constant 176 : index
    %c0_60 = arith.constant 0 : index
    %165 = vector.load %arg5[%c176, %c0_60] : memref<208x128xbf16, #tpu.memory_space<vmem>>, vector<32x2xbf16>
    %166 = arith.truncf %164 : vector<1x32xf32> to vector<1x32xbf16>
    %cst_61 = arith.constant dense<0.000000e+00> : vector<1x2xf32>
    %167 = tpu.matmul %166, %165, %cst_61 {dimension_numbers = #tpu.dot_dimension_numbers<[1], [0], [0], [1], [0, 0, 1, 1], [], []>} : vector<1x32xbf16>, vector<32x2xbf16>, vector<1x2xf32> -> vector<1x2xf32>
    %c11 = arith.constant 11 : index
    %c0_62 = arith.constant 0 : index
    %168 = vector.load %arg4[%c11, %c0_62] : memref<12x128xf32, #tpu.memory_space<vmem>>, vector<1x2xf32>
    %169 = arith.addf %167, %168 : vector<1x2xf32>
    %c0_63 = arith.constant 0 : index
    %c0_64 = arith.constant 0 : index
    %c0_65 = arith.constant 0 : index
    %170 = vector.load %arg7[%c0_63, %c0_64, %c0_65] : memref<1x1x2xf32, #tpu.memory_space<vmem>>, vector<1x1x2xf32>
    %171 = vector.shape_cast %170 : vector<1x1x2xf32> to vector<1x2xf32>
    %172 = vector.shape_cast %169 : vector<1x2xf32> to vector<1x1x2xf32>
    tpu.vector_store %arg7[%c0_63, %c0_64, %c0_65], %172 {strides = array<i32>} : memref<1x1x2xf32, #tpu.memory_space<vmem>>, vector<1x1x2xf32>,
    return
  }
  func.func @transform_0(%arg0: i32) -> (i32, i32, i32) {
    %c0_i32 = arith.constant 0 : i32
    %c0_i32_0 = arith.constant 0 : i32
    %c0_i32_1 = arith.constant 0 : i32
    return %arg0, %c0_i32, %c0_i32_0 : i32, i32, i32
  }
  func.func @transform_1(%arg0: i32) -> (i32, i32, i32) {
    %c0_i32 = arith.constant 0 : i32
    %c0_i32_0 = arith.constant 0 : i32
    %c0_i32_1 = arith.constant 0 : i32
    return %arg0, %c0_i32, %c0_i32_0 : i32, i32, i32
  }
  func.func @transform_2(%arg0: i32) -> (i32, i32, i32) {
    %c0_i32 = arith.constant 0 : i32
    %c0_i32_0 = arith.constant 0 : i32
    %c0_i32_1 = arith.constant 0 : i32
    return %arg0, %c0_i32, %c0_i32_0 : i32, i32, i32
  }
  func.func @transform_3(%arg0: i32) -> (i32, i32) {
    %c0_i32 = arith.constant 0 : i32
    %c0_i32_0 = arith.constant 0 : i32
    %c0_i32_1 = arith.constant 0 : i32
    return %c0_i32, %c0_i32_0 : i32, i32
  }
  func.func @transform_4(%arg0: i32) -> (i32, i32) {
    %c0_i32 = arith.constant 0 : i32
    %c0_i32_0 = arith.constant 0 : i32
    %c0_i32_1 = arith.constant 0 : i32
    return %c0_i32, %c0_i32_0 : i32, i32
  }
  func.func @transform_5(%arg0: i32) -> (i32, i32) {
    %c0_i32 = arith.constant 0 : i32
    %c0_i32_0 = arith.constant 0 : i32
    %c0_i32_1 = arith.constant 0 : i32
    return %c0_i32, %c0_i32_0 : i32, i32
  }
  func.func @transform_6(%arg0: i32) -> (i32, i32, i32) {
    %c0_i32 = arith.constant 0 : i32
    %c0_i32_0 = arith.constant 0 : i32
    %c0_i32_1 = arith.constant 0 : i32
    return %arg0, %c0_i32, %c0_i32_0 : i32, i32, i32
  }
}

</mosaic_0001>

<llo_original>
// kernel: forward.1
$region0: #{forward.1}
  #allocation0 [shape = 'u32[]', space=smem, size = 0x4, offset = 0x4, fixed_abs, tag = 'smem constant byte address 0x4 - core index']
  #allocation1 [shape = 'u32[72,128]{1,0:T(1,128)}', space=vmem, size = 0x9000, scoped, tag = 'internal scratch']
  %s0 = inlined_call_operand.vmem [shape: f32[2,8,32], index: 0, kind: input, shape index: {}]
  %s1 = inlined_call_operand.vmem [shape: f32[2,1,8], index: 1, kind: input, shape index: {}]
  %s2 = inlined_call_operand.vmem [shape: bf16[2,147,64], index: 2, kind: input, shape index: {}]
  %s3 = inlined_call_operand.vmem [shape: f32[12,128], index: 3, kind: input, shape index: {}]
  %s4 = inlined_call_operand.vmem [shape: bf16[208,128], index: 4, kind: input, shape index: {}]
  %s5 = inlined_call_operand.vmem [shape: bf16[8,147], index: 5, kind: input, shape index: {}]
  %s6 = inlined_call_operand.hbm [shape: f32[2,1,2], index: 6, kind: output, shape index: {}]
  %s7 = sld [smem:[#allocation0]]
  $region57: #{forward.1} parent=0
    _
  %s9 = ssub.s32 1, %s7
  %s10 = scalar_select 0, %s9, %s7
  $region1: #{forward.1} parent=0
    #allocation2 [shape = 'u8[1024]{0}', space=vmem, size = 0x400, scoped, tag = 'output window, operand 0']
    #allocation3 [shape = 's32[2]{0}', space=sflag, size = 0x8, scoped, tag = 'scoped memory for forward.1']
    %11 = vsyncpa [#allocation3], 0
    %s12 = scalar_lea.sflag [#allocation3], 1
    %13 = vsyncpa %s12, 0
    loop: start=0, step=1, limit=4
    $region2: #{forward.1} parent=1 // loop_pre_header
      _
    $region3: #{forward.1} parent=1 // loop_header
      %s15 = sphi 0, %s19
      %p16 = scmp.ge.s32.totalorder %s15, 4
      %s25 = sphi 0, %s27
      %s28 = sphi 0, %s25
      %s29 = sphi 0, %s28
      %s45 = sphi 0, %s29
      %s51 = sphi 0, %s53
      %s54 = sphi 0, %s51
      %s55 = sphi 0, %s54
      %s71 = sphi 0, %s55
      %s77 = sphi 0, %s79
      %s80 = sphi 0, %s77
      %s81 = sphi 0, %s80
      %s97 = sphi 0, %s81
      %s101 = sphi 0, %s101
      %s103 = sphi 0, %s101
      %s104 = sphi 0, %s103
      %s118 = sphi 0, %s104
      %s122 = sphi 0, %s122
      %s124 = sphi 0, %s122
      %s125 = sphi 0, %s124
      %s139 = sphi 0, %s125
      %s143 = sphi 0, %s143
      %s145 = sphi 0, %s143
      %s146 = sphi 0, %s145
      %s160 = sphi 0, %s146
      %s166 = sphi 0, %s168
      %s169 = sphi 0, %s166
      %s170 = sphi 0, %s169
      %s186 = sphi 0, %s170
    $region4: #{forward.1} parent=1 // loop_header_branch
      %18 = sbr.rel (%p16) target = $region8
    $region5: #{forward.1} parent=1 // loop_body
      %s20 = ssub.s32 %s15, 1
      %s21 = ssub.s32 %s15, 2
      %s22 = sadd.s32 %s15, 1
      %s23 = ssub.s32 %s15, %s22
      %p24 = scmp.eq.s32.totalorder %s23, 0
      %s26 = sadd.s32 %s25, 1
      %s27 = scalar_select %p24, %s25, %s26
      %p30 = pneg %p24
      %p31 = scmp.eq.s32.totalorder %s15, 1
      %p32 = por %p30, %p31
      %p33 = scmp.ne.s32.totalorder %s25, %s28
      %p34 = scmp.eq.s32.totalorder %s15, 0
      %p35 = por %p33, %p34
      %p36 = scmp.ne.s32.totalorder %s25, %s28
      %p37 = scmp.eq.s32.totalorder %s20, 1
      %p38 = por %p36, %p37
      %p39 = scmp.ne.s32.totalorder %s28, %s29
      %p40 = scmp.eq.s32.totalorder %s20, 0
      %p41 = por %p39, %p40
      %p42 = scmp.ne.s32.totalorder %s28, %s29
      %p43 = scmp.eq.s32.totalorder %s21, 1
      %p44 = por %p42, %p43
      %p46 = scmp.ne.s32.totalorder %s29, %s45
      %p47 = scmp.eq.s32.totalorder %s21, 0
      %p48 = por %p46, %p47
      %s49 = ssub.s32 %s15, %s22
      %p50 = scmp.eq.s32.totalorder %s49, 0
      %s52 = sadd.s32 %s51, 1
      %s53 = scalar_select %p50, %s51, %s52
      %p56 = pneg %p50
      %p57 = scmp.eq.s32.totalorder %s15, 1
      %p58 = por %p56, %p57
      %p59 = scmp.ne.s32.totalorder %s51, %s54
      %p60 = scmp.eq.s32.totalorder %s15, 0
      %p61 = por %p59, %p60
      %p62 = scmp.ne.s32.totalorder %s51, %s54
      %p63 = scmp.eq.s32.totalorder %s20, 1
      %p64 = por %p62, %p63
      %p65 = scmp.ne.s32.totalorder %s54, %s55
      %p66 = scmp.eq.s32.totalorder %s20, 0
      %p67 = por %p65, %p66
      %p68 = scmp.ne.s32.totalorder %s54, %s55
      %p69 = scmp.eq.s32.totalorder %s21, 1
      %p70 = por %p68, %p69
      %p72 = scmp.ne.s32.totalorder %s55, %s71
      %p73 = scmp.eq.s32.totalorder %s21, 0
      %p74 = por %p72, %p73
      %s75 = ssub.s32 %s15, %s22
      %p76 = scmp.eq.s32.totalorder %s75, 0
      %s78 = sadd.s32 %s77, 1
      %s79 = scalar_select %p76, %s77, %s78
      %p82 = pneg %p76
      %p83 = scmp.eq.s32.totalorder %s15, 1
      %p84 = por %p82, %p83
      %p85 = scmp.ne.s32.totalorder %s77, %s80
      %p86 = scmp.eq.s32.totalorder %s15, 0
      %p87 = por %p85, %p86
      %p88 = scmp.ne.s32.totalorder %s77, %s80
      %p89 = scmp.eq.s32.totalorder %s20, 1
      %p90 = por %p88, %p89
      %p91 = scmp.ne.s32.totalorder %s80, %s81
      %p92 = scmp.eq.s32.totalorder %s20, 0
      %p93 = por %p91, %p92
      %p94 = scmp.ne.s32.totalorder %s80, %s81
      %p95 = scmp.eq.s32.totalorder %s21, 1
      %p96 = por %p94, %p95
      %p98 = scmp.ne.s32.totalorder %s81, %s97
      %p99 = scmp.eq.s32.totalorder %s21, 0
      %p100 = por %p98, %p99
      %s102 = sadd.s32 %s101, 1
      %p105 = scmp.eq.s32.totalorder %s15, 1
      %p106 = scmp.ne.s32.totalorder %s101, %s103
      %p107 = scmp.eq.s32.totalorder %s15, 0
      %p108 = por %p106, %p107
      %p109 = scmp.ne.s32.totalorder %s101, %s103
      %p110 = scmp.eq.s32.totalorder %s20, 1
      %p111 = por %p109, %p110
      %p112 = scmp.ne.s32.totalorder %s103, %s104
      %p113 = scmp.eq.s32.totalorder %s20, 0
      %p114 = por %p112, %p113
      %p115 = scmp.ne.s32.totalorder %s103, %s104
      %p116 = scmp.eq.s32.totalorder %s21, 1
      %p117 = por %p115, %p116
      %p119 = scmp.ne.s32.totalorder %s104, %s118
      %p120 = scmp.eq.s32.totalorder %s21, 0
      %p121 = por %p119, %p120
      %s123 = sadd.s32 %s122, 1
      %p126 = scmp.eq.s32.totalorder %s15, 1
      %p127 = scmp.ne.s32.totalorder %s122, %s124
      %p128 = scmp.eq.s32.totalorder %s15, 0
      %p129 = por %p127, %p128
      %p130 = scmp.ne.s32.totalorder %s122, %s124
      %p131 = scmp.eq.s32.totalorder %s20, 1
      %p132 = por %p130, %p131
      %p133 = scmp.ne.s32.totalorder %s124, %s125
      %p134 = scmp.eq.s32.totalorder %s20, 0
      %p135 = por %p133, %p134
      %p136 = scmp.ne.s32.totalorder %s124, %s125
      %p137 = scmp.eq.s32.totalorder %s21, 1
      %p138 = por %p136, %p137
      %p140 = scmp.ne.s32.totalorder %s125, %s139
      %p141 = scmp.eq.s32.totalorder %s21, 0
      %p142 = por %p140, %p141
      %s144 = sadd.s32 %s143, 1
      %p147 = scmp.eq.s32.totalorder %s15, 1
      %p148 = scmp.ne.s32.totalorder %s143, %s145
      %p149 = scmp.eq.s32.totalorder %s15, 0
      %p150 = por %p148, %p149
      %p151 = scmp.ne.s32.totalorder %s143, %s145
      %p152 = scmp.eq.s32.totalorder %s20, 1
      %p153 = por %p151, %p152
      %p154 = scmp.ne.s32.totalorder %s145, %s146
      %p155 = scmp.eq.s32.totalorder %s20, 0
      %p156 = por %p154, %p155
      %p157 = scmp.ne.s32.totalorder %s145, %s146
      %p158 = scmp.eq.s32.totalorder %s21, 1
      %p159 = por %p157, %p158
      %p161 = scmp.ne.s32.totalorder %s146, %s160
      %p162 = scmp.eq.s32.totalorder %s21, 0
      %p163 = por %p161, %p162
      %s164 = ssub.s32 %s15, %s22
      %p165 = scmp.eq.s32.totalorder %s164, 0
      %s167 = sadd.s32 %s166, 1
      %s168 = scalar_select %p165, %s166, %s167
      %p171 = pneg %p165
      %p172 = scmp.eq.s32.totalorder %s15, 1
      %p173 = por %p171, %p172
      %p174 = scmp.ne.s32.totalorder %s166, %s169
      %p175 = scmp.eq.s32.totalorder %s15, 0
      %p176 = por %p174, %p175
      %p177 = scmp.ne.s32.totalorder %s166, %s169
      %p178 = scmp.eq.s32.totalorder %s20, 1
      %p179 = por %p177, %p178
      %p180 = scmp.ne.s32.totalorder %s169, %s170
      %p181 = scmp.eq.s32.totalorder %s20, 0
      %p182 = por %p180, %p181
      %p183 = scmp.ne.s32.totalorder %s169, %s170
      %p184 = scmp.eq.s32.totalorder %s21, 1
      %p185 = por %p183, %p184
      %p187 = scmp.ne.s32.totalorder %s170, %s186
      %p188 = scmp.eq.s32.totalorder %s21, 0
      %p189 = por %p187, %p188
      %p190 = scmp.le.s32.totalorder 1, %s15
      %p191 = scmp.lt.s32.totalorder %s15, 3
      %p192 = pnand %p190, %p191
      %p193 = pneg %p192
      // Predicated region
      $region9: #{forward.1} parent=5 // pred_check
        _
      $region10: #{forward.1} parent=5 // pred_check_branch
        %195 = sbr.rel (%p192) target = $region12
      $region11: #{forward.1} parent=5 // pred_region
        %s196 = ssub.s32 %s15, 1
        // Predicated region
        $region13: #{forward.1} parent=11 // pred_check
          %p197 = pneg %p114
        $region14: #{forward.1} parent=11 // pred_check_branch
          %199 = sbr.rel (%p197) target = $region16
        $region15: #{forward.1} parent=11 // pred_region
          _
        $region16: #{forward.1} parent=11 // pred_fallthru
          _
        // Predicated region
        $region17: #{forward.1} parent=11 // pred_check
          %p200 = pneg %p135
        $region18: #{forward.1} parent=11 // pred_check_branch
          %202 = sbr.rel (%p200) target = $region20
        $region19: #{forward.1} parent=11 // pred_region
          _
        $region20: #{forward.1} parent=11 // pred_fallthru
          _
        // Predicated region
        $region21: #{forward.1} parent=11 // pred_check
          %p203 = pneg %p156
        $region22: #{forward.1} parent=11 // pred_check_branch
          %205 = sbr.rel (%p203) target = $region24
        $region23: #{forward.1} parent=11 // pred_region
          _
        $region24: #{forward.1} parent=11 // pred_fallthru
          _
      $region12: #{forward.1} parent=5 // pred_fallthru
        _
      %p206 = scmp.lt.s32.totalorder %s15, 2
      // Predicated region
      $region25: #{forward.1} parent=5 // pred_check
        %p207 = pneg %p206
      $region26: #{forward.1} parent=5 // pred_check_branch
        %209 = sbr.rel (%p207) target = $region28
      $region27: #{forward.1} parent=5 // pred_region
        // Predicated region
        $region29: #{forward.1} parent=27 // pred_check
          %p210 = pneg %p35
        $region30: #{forward.1} parent=27 // pred_check_branch
          %212 = sbr.rel (%p210) target = $region32
        $region31: #{forward.1} parent=27 // pred_region
          %p213 = scmp.lt.s32.totalorder %s15, 1
          %s214 = scalar_select %p213, %s15, 1
          %s215 = smul.addr %s214, 8
          %s216 = scalar_lea.vmem %s0, %s215
        $region32: #{forward.1} parent=27 // pred_fallthru
          _
        // Predicated region
        $region33: #{forward.1} parent=27 // pred_check
          %p217 = pneg %p61
        $region34: #{forward.1} parent=27 // pred_check_branch
          %219 = sbr.rel (%p217) target = $region36
        $region35: #{forward.1} parent=27 // pred_region
          %p220 = scmp.lt.s32.totalorder %s15, 1
          %s221 = scalar_select %p220, %s15, 1
          %s222 = scalar_lea.vmem %s1, %s221
        $region36: #{forward.1} parent=27 // pred_fallthru
          _
        // Predicated region
        $region37: #{forward.1} parent=27 // pred_check
          %p223 = pneg %p87
        $region38: #{forward.1} parent=27 // pred_check_branch
          %225 = sbr.rel (%p223) target = $region40
        $region39: #{forward.1} parent=27 // pred_region
          %p226 = scmp.lt.s32.totalorder %s15, 1
          %s227 = scalar_select %p226, %s15, 1
          %s228 = smul.addr %s227, 19
          %s229 = smul.addr %s228, 4
          %s230 = scalar_lea.vmem %s2, %s229
        $region40: #{forward.1} parent=27 // pred_fallthru
          _
      $region28: #{forward.1} parent=5 // pred_fallthru
        _
      %p231 = scmp.le.s32.totalorder 1, %s15
      %p232 = scmp.lt.s32.totalorder %s15, 3
      %p233 = pnand %p231, %p232
      %p234 = pneg %p233
      // Predicated region
      $region41: #{forward.1} parent=5 // pred_check
        _
      $region42: #{forward.1} parent=5 // pred_check_branch
        %236 = sbr.rel (%p233) target = $region44
      $region43: #{forward.1} parent=5 // pred_region
        %s237 = ssub.s32 %s15, 1
        %p238 = scmp.lt.s32.totalorder %s20, 1
        %s239 = scalar_select %p238, %s20, 1
        %s240 = smul.addr %s239, 8
        %s241 = scalar_lea.vmem %s0, %s240
        %p242 = pneg %p41
        %p243 = pneg %p38
        %p244 = scmp.lt.s32.totalorder %s20, 1
        %s245 = scalar_select %p244, %s20, 1
        %s246 = scalar_lea.vmem %s1, %s245
        %p247 = pneg %p67
        %p248 = pneg %p64
        %p249 = scmp.lt.s32.totalorder %s20, 1
        %s250 = scalar_select %p249, %s20, 1
        %s251 = smul.addr %s250, 19
        %s252 = smul.addr %s251, 4
        %s253 = scalar_lea.vmem %s2, %s252
        %p254 = pneg %p93
        %p255 = pneg %p90
        %p256 = pneg %p114
        %p257 = pneg %p111
        %p258 = pneg %p135
        %p259 = pneg %p132
        %p260 = pneg %p156
        %p261 = pneg %p153
        %p262 = pneg %p182
        %p263 = pneg %p179
        %s264 = sand.u32 %s169, 1
        %s265 = scalar_lea.sflag [#allocation3], %s264
        %s266 = sand.u32 %s169, 1
        %s267 = scalar_lea.vmem [#allocation2], %s266
        %p268 = scmp.lt.s32.totalorder %s20, 1
        %s269 = scalar_select %p268, %s20, 1
        %s270 = smul.addr %s269, 8
        %s271 = scalar_lea.vmem %s0, %s270
        %p272 = scmp.lt.s32.totalorder %s20, 1
        %s273 = scalar_select %p272, %s20, 1
        %s274 = scalar_lea.vmem %s1, %s273
        %p275 = scmp.lt.s32.totalorder %s20, 1
        %s276 = scalar_select %p275, %s20, 1
        %s277 = smul.addr %s276, 19
        %s278 = smul.addr %s277, 4
        %s279 = scalar_lea.vmem %s2, %s278
        %v281 = vld [vmem:[%s271] sm:$0xff]
        %v282 = vld [vmem:[%s3] sm:$0x1]
        %v283 = vld [vmem:[%s3 + $0x1] sm:$0x1]
        %vm284 = vcmask 261120
        %v285 = vsel %vm284, %v281, 0.0
        %286 = vadd.xlane.f32.xlu0 %v285
        %v287 = vpop.xlane.xlu0 %286
        %v288 = vrcp.pop 32.0
        %v289 = vmul.f32 32.0, %v288
        %v290 = vsub.f32 1.0, %v289
        %v291 = vmul.f32 %v288, %v290
        %v292 = vadd.f32 %v288, %v291
        %vm293 = vweird.f32 %v288
        %v294 = vsel %vm293, %v288, %v292
        %v295 = vmul.f32 %v287, %v294
        %v296 = vsub.f32 %v281, %v295
        %v297 = vmul.f32 %v296, %v296
        %v298 = vsel %vm284, %v297, 0.0
        %299 = vadd.xlane.f32.xlu0 %v298
        %v300 = vpop.xlane.xlu0 %299
        %v301 = vmul.f32 %v300, %v294
        %v302 = vadd.f32 %v301, 1e-12
        %v303 = vrsqrt.pop %v302
        %v304 = vmul.f32 %v303, %v302
        %v305 = vmul.f32 %v304, %v303
        %v306 = vmul.f32 0.5, %v305
        %v307 = vsub.f32 1.5, %v306
        %v308 = vmul.f32 %v303, %v307
        %vm309 = vweird.f32 %v302
        %vm310 = vweird.f32 %v303
        %vm311 = vmor %vm309, %vm310
        %v312 = vsel %vm311, %v303, %v308
        %v313 = vmul.f32 %v296, %v312
        %v314 = vperm.slane %v282, 0
        %v315 = vmul.f32 %v313, %v314
        %v316 = vperm.slane %v283, 0
        %v317 = vadd.f32 %v315, %v316
        %v318 = vld [vmem:[%s4] sm:$0xf]
        %v319 = vld [vmem:[%s4 + $0x4] sm:$0xf]
        %v320 = vld [vmem:[%s4 + $0x8] sm:$0xf]
        %v321 = vld [vmem:[%s4 + $0xc] sm:$0xf]
        %v322 = vpack.c.bf16 %v317, %v317
        %v323 = vld [vmem:[%s3 + $0x2] sm:$0x1]
        %v324 = vperm.slane %v323, 0
        %v329 = vunpack.c.l.b16 %v318
        %v330 = vunpack.c.l.b16 %v319
        %v331 = vunpack.c.l.b16 %v320
        %v332 = vunpack.c.l.b16 %v321
        %v333 = vpack.c.b16 %v330, %v329
        %v334 = vpack.c.b16 %v332, %v331
        %v338 = vsel %vm284, %v322, 0
        %340 = vmatpush.bf16.msra.mxu0 0
        %341 = vmatpush.bf16.msra.mxu0 0
        %342 = vmatpush.bf16.msra.mxu0 0
        %343 = vmatpush.bf16.msra.mxu0 0
        %344 = vmatpush.bf16.msra.mxu0 0
        %345 = vmatpush.bf16.msra.mxu0 0
        %346 = vmatpush.bf16.msra.mxu0 %v334
        %347 = vmatpush.bf16.msra.mxu0 %v333
        %348 = vmatmul.bf16.gmra.mxu0 %v338
        %v349 = vpop.f32.mrf.mxu0
        %v350 = vadd.f32 %v324, %v349
        %v351 = vpop.f32.mrf.mxu0
        %352 = vdwg.mxu0
        %353 = vxpose.xlu0.b32.start [1/16] %v350, 128
        %354 = vxpose.xlu0.b32.cont [2/16] 0.0, 128
        %355 = vxpose.xlu0.b32.cont [3/16] 0.0, 128
        %356 = vxpose.xlu0.b32.cont [4/16] 0.0, 128
        %357 = vxpose.xlu0.b32.cont [5/16] 0.0, 128
        %358 = vxpose.xlu0.b32.cont [6/16] 0.0, 128
        %359 = vxpose.xlu0.b32.cont [7/16] 0.0, 128
        %360 = vxpose.xlu0.b32.cont [8/16] 0.0, 128
        %361 = vxpose.xlu0.b32.cont [9/16] 0.0, 128
        %362 = vxpose.xlu0.b32.cont [10/16] 0.0, 128
        %363 = vxpose.xlu0.b32.cont [11/16] 0.0, 128
        %364 = vxpose.xlu0.b32.cont [12/16] 0.0, 128
        %365 = vxpose.xlu0.b32.cont [13/16] 0.0, 128
        %366 = vxpose.xlu0.b32.cont [14/16] 0.0, 128
        %367 = vxpose.xlu0.b32.cont [15/16] 0.0, 128
        %368 = vxpose.xlu0.b32.end [16/16] 0.0, 128
        %v369 = vpop.trf.xlu0
        %v370 = vpop.trf.xlu0
        %v371 = vpop.trf.xlu0
        %v372 = vpop.trf.xlu0
        %v373 = vpop.trf.xlu0
        %v374 = vpop.trf.xlu0
        %v375 = vpop.trf.xlu0
        %v376 = vpop.trf.xlu0
        %v377 = vpop.trf.xlu0
        %v378 = vpop.trf.xlu0
        %v379 = vpop.trf.xlu0
        %v380 = vpop.trf.xlu0
        %v381 = vpop.trf.xlu0
        %v382 = vpop.trf.xlu0
        %v383 = vpop.trf.xlu0
        %v384 = vpop.trf.xlu0
        %385 = vxpose.xlu0.b32.start [1/16] %v369, 128
        %386 = vxpose.xlu0.b32.cont [2/16] 0.0, 128
        %387 = vxpose.xlu0.b32.cont [3/16] 0.0, 128
        %388 = vxpose.xlu0.b32.cont [4/16] 0.0, 128
        %389 = vxpose.xlu0.b32.cont [5/16] 0.0, 128
        %390 = vxpose.xlu0.b32.cont [6/16] 0.0, 128
        %391 = vxpose.xlu0.b32.cont [7/16] 0.0, 128
        %392 = vxpose.xlu0.b32.cont [8/16] 0.0, 128
        %393 = vxpose.xlu0.b32.cont [9/16] 0.0, 128
        %394 = vxpose.xlu0.b32.cont [10/16] 0.0, 128
        %395 = vxpose.xlu0.b32.cont [11/16] 0.0, 128
        %396 = vxpose.xlu0.b32.cont [12/16] 0.0, 128
        %397 = vxpose.xlu0.b32.cont [13/16] 0.0, 128
        %398 = vxpose.xlu0.b32.cont [14/16] 0.0, 128
        %399 = vxpose.xlu0.b32.cont [15/16] 0.0, 128
        %400 = vxpose.xlu0.b32.end [16/16] 0.0, 128
        %v401 = vpop.trf.xlu0
        %v402 = vpop.trf.xlu0
        %v403 = vpop.trf.xlu0
        %v404 = vpop.trf.xlu0
        %v405 = vpop.trf.xlu0
        %v406 = vpop.trf.xlu0
        %v407 = vpop.trf.xlu0
        %v408 = vpop.trf.xlu0
        %v409 = vpop.trf.xlu0
        %v410 = vpop.trf.xlu0
        %v411 = vpop.trf.xlu0
        %v412 = vpop.trf.xlu0
        %v413 = vpop.trf.xlu0
        %v414 = vpop.trf.xlu0
        %v415 = vpop.trf.xlu0
        %v416 = vpop.trf.xlu0
        %417 = vxpose.xlu0.b32.start [1/16] %v370, 128
        %418 = vxpose.xlu0.b32.cont [2/16] 0.0, 128
        %419 = vxpose.xlu0.b32.cont [3/16] 0.0, 128
        %420 = vxpose.xlu0.b32.cont [4/16] 0.0, 128
        %421 = vxpose.xlu0.b32.cont [5/16] 0.0, 128
        %422 = vxpose.xlu0.b32.cont [6/16] 0.0, 128
        %423 = vxpose.xlu0.b32.cont [7/16] 0.0, 128
        %424 = vxpose.xlu0.b32.cont [8/16] 0.0, 128
        %425 = vxpose.xlu0.b32.cont [9/16] 0.0, 128
        %426 = vxpose.xlu0.b32.cont [10/16] 0.0, 128
        %427 = vxpose.xlu0.b32.cont [11/16] 0.0, 128
        %428 = vxpose.xlu0.b32.cont [12/16] 0.0, 128
        %429 = vxpose.xlu0.b32.cont [13/16] 0.0, 128
        %430 = vxpose.xlu0.b32.cont [14/16] 0.0, 128
        %431 = vxpose.xlu0.b32.cont [15/16] 0.0, 128
        %432 = vxpose.xlu0.b32.end [16/16] 0.0, 128
        %v433 = vpop.trf.xlu0
        %v434 = vpop.trf.xlu0
        %v435 = vpop.trf.xlu0
        %v436 = vpop.trf.xlu0
        %v437 = vpop.trf.xlu0
        %v438 = vpop.trf.xlu0
        %v439 = vpop.trf.xlu0
        %v440 = vpop.trf.xlu0
        %v441 = vpop.trf.xlu0
        %v442 = vpop.trf.xlu0
        %v443 = vpop.trf.xlu0
        %v444 = vpop.trf.xlu0
        %v445 = vpop.trf.xlu0
        %v446 = vpop.trf.xlu0
        %v447 = vpop.trf.xlu0
        %v448 = vpop.trf.xlu0
        %449 = vxpose.xlu0.b32.start [1/16] %v371, 128
        %450 = vxpose.xlu0.b32.cont [2/16] 0.0, 128
        %451 = vxpose.xlu0.b32.cont [3/16] 0.0, 128
        %452 = vxpose.xlu0.b32.cont [4/16] 0.0, 128
        %453 = vxpose.xlu0.b32.cont [5/16] 0.0, 128
        %454 = vxpose.xlu0.b32.cont [6/16] 0.0, 128
        %455 = vxpose.xlu0.b32.cont [7/16] 0.0, 128
        %456 = vxpose.xlu0.b32.cont [8/16] 0.0, 128
        %457 = vxpose.xlu0.b32.cont [9/16] 0.0, 128
        %458 = vxpose.xlu0.b32.cont [10/16] 0.0, 128
        %459 = vxpose.xlu0.b32.cont [11/16] 0.0, 128
        %460 = vxpose.xlu0.b32.cont [12/16] 0.0, 128
        %461 = vxpose.xlu0.b32.cont [13/16] 0.0, 128
        %462 = vxpose.xlu0.b32.cont [14/16] 0.0, 128
        %463 = vxpose.xlu0.b32.cont [15/16] 0.0, 128
        %464 = vxpose.xlu0.b32.end [16/16] 0.0, 128
        %v465 = vpop.trf.xlu0
        %v466 = vpop.trf.xlu0
        %v467 = vpop.trf.xlu0
        %v468 = vpop.trf.xlu0
        %v469 = vpop.trf.xlu0
        %v470 = vpop.trf.xlu0
        %v471 = vpop.trf.xlu0
        %v472 = vpop.trf.xlu0
        %v473 = vpop.trf.xlu0
        %v474 = vpop.trf.xlu0
        %v475 = vpop.trf.xlu0
        %v476 = vpop.trf.xlu0
        %v477 = vpop.trf.xlu0
        %v478 = vpop.trf.xlu0
        %v479 = vpop.trf.xlu0
        %v480 = vpop.trf.xlu0
        %481 = vxpose.xlu0.b32.start [1/16] %v372, 128
        %482 = vxpose.xlu0.b32.cont [2/16] 0.0, 128
        %483 = vxpose.xlu0.b32.cont [3/16] 0.0, 128
        %484 = vxpose.xlu0.b32.cont [4/16] 0.0, 128
        %485 = vxpose.xlu0.b32.cont [5/16] 0.0, 128
        %486 = vxpose.xlu0.b32.cont [6/16] 0.0, 128
        %487 = vxpose.xlu0.b32.cont [7/16] 0.0, 128
        %488 = vxpose.xlu0.b32.cont [8/16] 0.0, 128
        %489 = vxpose.xlu0.b32.cont [9/16] 0.0, 128
        %490 = vxpose.xlu0.b32.cont [10/16] 0.0, 128
        %491 = vxpose.xlu0.b32.cont [11/16] 0.0, 128
        %492 = vxpose.xlu0.b32.cont [12/16] 0.0, 128
        %493 = vxpose.xlu0.b32.cont [13/16] 0.0, 128
        %494 = vxpose.xlu0.b32.cont [14/16] 0.0, 128
        %495 = vxpose.xlu0.b32.cont [15/16] 0.0, 128
        %496 = vxpose.xlu0.b32.end [16/16] 0.0, 128
        %v497 = vpop.trf.xlu0
        %v498 = vpop.trf.xlu0
        %v499 = vpop.trf.xlu0
        %v500 = vpop.trf.xlu0
        %v501 = vpop.trf.xlu0
        %v502 = vpop.trf.xlu0
        %v503 = vpop.trf.xlu0
        %v504 = vpop.trf.xlu0
        %v505 = vpop.trf.xlu0
        %v506 = vpop.trf.xlu0
        %v507 = vpop.trf.xlu0
        %v508 = vpop.trf.xlu0
        %v509 = vpop.trf.xlu0
        %v510 = vpop.trf.xlu0
        %v511 = vpop.trf.xlu0
        %v512 = vpop.trf.xlu0
        %v513 = vpack.c.bf16 %v401, %v401
        %v514 = vpack.c.bf16 %v433, %v433
        %v515 = vpack.c.bf16 %v465, %v465
        %v516 = vpack.c.bf16 %v497, %v497
        %v517 = vpack.c.bf16 %v373, %v373
        %v518 = vpack.c.bf16 %v374, %v374
        %v519 = vpack.c.bf16 %v375, %v375
        %v520 = vpack.c.bf16 %v376, %v376
        %vm521 = vcmask 64512
        %v523 = vsel %vm521, %v513, 0
        %vm525 = vcmask 1043456
        %v527 = vsel %vm525, %v517, 0
        %529 = vmatpush.bf16.msra.mxu0 0
        %530 = vmatpush.bf16.msra.mxu0 0
        %531 = vmatpush.bf16.msra.mxu0 0
        %532 = vmatpush.bf16.msra.mxu0 0
        %533 = vmatpush.bf16.msra.mxu0 0
        %534 = vmatpush.bf16.msra.mxu0 0
        %535 = vmatpush.bf16.msra.mxu0 0
        %536 = vmatpush.bf16.msra.mxu0 %v527
        %537 = vmatmul.bf16.gmra.mxu0 %v523
        %v538 = vpop.f32.mrf.mxu0
        %v539 = vadd.f32 0.0, %v538
        %v540 = vpop.f32.mrf.mxu0
        %541 = vdwg.mxu0
        %v543 = vsel %vm521, %v514, 0
        %v546 = vsel %vm525, %v518, 0
        %548 = vmatpush.bf16.msra.mxu0 0
        %549 = vmatpush.bf16.msra.mxu0 0
        %550 = vmatpush.bf16.msra.mxu0 0
        %551 = vmatpush.bf16.msra.mxu0 0
        %552 = vmatpush.bf16.msra.mxu0 0
        %553 = vmatpush.bf16.msra.mxu0 0
        %554 = vmatpush.bf16.msra.mxu0 0
        %555 = vmatpush.bf16.msra.mxu0 %v546
        %556 = vmatmul.bf16.gmra.mxu0 %v543
        %v557 = vpop.f32.mrf.mxu0
        %v558 = vadd.f32 0.0, %v557
        %v559 = vpop.f32.mrf.mxu0
        %560 = vdwg.mxu0
        %v562 = vsel %vm521, %v515, 0
        %v565 = vsel %vm525, %v519, 0
        %567 = vmatpush.bf16.msra.mxu0 0
        %568 = vmatpush.bf16.msra.mxu0 0
        %569 = vmatpush.bf16.msra.mxu0 0
        %570 = vmatpush.bf16.msra.mxu0 0
        %571 = vmatpush.bf16.msra.mxu0 0
        %572 = vmatpush.bf16.msra.mxu0 0
        %573 = vmatpush.bf16.msra.mxu0 0
        %574 = vmatpush.bf16.msra.mxu0 %v565
        %575 = vmatmul.bf16.gmra.mxu0 %v562
        %v576 = vpop.f32.mrf.mxu0
        %v577 = vadd.f32 0.0, %v576
        %v578 = vpop.f32.mrf.mxu0
        %579 = vdwg.mxu0
        %v581 = vsel %vm521, %v516, 0
        %v584 = vsel %vm525, %v520, 0
        %586 = vmatpush.bf16.msra.mxu0 0
        %587 = vmatpush.bf16.msra.mxu0 0
        %588 = vmatpush.bf16.msra.mxu0 0
        %589 = vmatpush.bf16.msra.mxu0 0
        %590 = vmatpush.bf16.msra.mxu0 0
        %591 = vmatpush.bf16.msra.mxu0 0
        %592 = vmatpush.bf16.msra.mxu0 0
        %593 = vmatpush.bf16.msra.mxu0 %v584
        %594 = vmatmul.bf16.gmra.mxu0 %v581
        %v595 = vpop.f32.mrf.mxu0
        %v596 = vadd.f32 0.0, %v595
        %v597 = vpop.f32.mrf.mxu0
        %598 = vdwg.mxu0
        %v599 = vmul.f32 %v539, 0.35355338
        %v600 = vmul.f32 %v558, 0.35355338
        %v601 = vmul.f32 %v577, 0.35355338
        %v602 = vmul.f32 %v596, 0.35355338
        %v603 = vld [vmem:[%s274] sm:$0x1]
        %v605 = vperm.slane %v603, 0
        %v607 = vadd.f32 %v599, %v605
        %v608 = vadd.f32 %v600, %v605
        %v609 = vadd.f32 %v601, %v605
        %v610 = vadd.f32 %v602, %v605
        %v611 = vsel %vm521, %v607, -inf
        %612 = vmax.xlane.f32.xlu0 %v611
        %v613 = vpop.xlane.xlu0 %612
        %v614 = vsel %vm521, %v608, -inf
        %615 = vmax.xlane.f32.xlu0 %v614
        %v616 = vpop.xlane.xlu0 %615
        %v617 = vsel %vm521, %v609, -inf
        %618 = vmax.xlane.f32.xlu0 %v617
        %v619 = vpop.xlane.xlu0 %618
        %v620 = vsel %vm521, %v610, -inf
        %621 = vmax.xlane.f32.xlu0 %v620
        %v622 = vpop.xlane.xlu0 %621
        %v623 = vsub.f32 %v607, %v613
        %v624 = vsub.f32 %v608, %v616
        %v625 = vsub.f32 %v609, %v619
        %v626 = vsub.f32 %v610, %v622
        %v627 = vmul.f32 %v623, 1.442695
        %v628 = vpow.pop %v627
        %v629 = vmul.f32 %v624, 1.442695
        %v630 = vpow.pop %v629
        %v631 = vmul.f32 %v625, 1.442695
        %v632 = vpow.pop %v631
        %v633 = vmul.f32 %v626, 1.442695
        %v634 = vpow.pop %v633
        %v635 = vsel %vm521, %v628, 0.0
        %636 = vadd.xlane.f32.xlu0 %v635
        %v637 = vpop.xlane.xlu0 %636
        %v638 = vsel %vm521, %v630, 0.0
        %639 = vadd.xlane.f32.xlu0 %v638
        %v640 = vpop.xlane.xlu0 %639
        %v641 = vsel %vm521, %v632, 0.0
        %642 = vadd.xlane.f32.xlu0 %v641
        %v643 = vpop.xlane.xlu0 %642
        %v644 = vsel %vm521, %v634, 0.0
        %645 = vadd.xlane.f32.xlu0 %v644
        %v646 = vpop.xlane.xlu0 %645
        %v647 = vrcp.pop %v637
        %v648 = vrcp.pop %v640
        %v649 = vrcp.pop %v643
        %v650 = vrcp.pop %v646
        %v651 = vmul.f32 %v628, %v647
        %v652 = vmul.f32 %v630, %v648
        %v653 = vmul.f32 %v632, %v649
        %v654 = vmul.f32 %v634, %v650
        %v655 = vpack.c.bf16 %v377, %v377
        %v656 = vpack.c.bf16 %v378, %v378
        %v657 = vpack.c.bf16 %v379, %v379
        %v658 = vpack.c.bf16 %v380, %v380
        %v659 = vpack.c.bf16 %v651, %v651
        %v660 = vpack.c.bf16 %v652, %v652
        %v661 = vpack.c.bf16 %v653, %v653
        %v662 = vpack.c.bf16 %v654, %v654
        %v664 = vsel %vm521, %v655, 0
        %v667 = vsel %vm521, %v659, 0
        %669 = vmatpush.bf16.xpose.msra.mxu0 0
        %670 = vmatpush.bf16.xpose.msra.mxu0 0
        %671 = vmatpush.bf16.xpose.msra.mxu0 0
        %672 = vmatpush.bf16.xpose.msra.mxu0 0
        %673 = vmatpush.bf16.xpose.msra.mxu0 0
        %674 = vmatpush.bf16.xpose.msra.mxu0 0
        %675 = vmatpush.bf16.xpose.msra.mxu0 0
        %676 = vmatpush.bf16.xpose.msra.mxu0 %v667
        %677 = vmatmul.bf16.gmra.mxu0 %v664
        %v678 = vpop.f32.mrf.mxu0
        %v679 = vadd.f32 0.0, %v678
        %v680 = vpop.f32.mrf.mxu0
        %681 = vdwg.mxu0
        %v683 = vsel %vm521, %v656, 0
        %v686 = vsel %vm521, %v660, 0
        %688 = vmatpush.bf16.xpose.msra.mxu0 0
        %689 = vmatpush.bf16.xpose.msra.mxu0 0
        %690 = vmatpush.bf16.xpose.msra.mxu0 0
        %691 = vmatpush.bf16.xpose.msra.mxu0 0
        %692 = vmatpush.bf16.xpose.msra.mxu0 0
        %693 = vmatpush.bf16.xpose.msra.mxu0 0
        %694 = vmatpush.bf16.xpose.msra.mxu0 0
        %695 = vmatpush.bf16.xpose.msra.mxu0 %v686
        %696 = vmatmul.bf16.gmra.mxu0 %v683
        %v697 = vpop.f32.mrf.mxu0
        %v698 = vadd.f32 0.0, %v697
        %v699 = vpop.f32.mrf.mxu0
        %700 = vdwg.mxu0
        %v702 = vsel %vm521, %v657, 0
        %v705 = vsel %vm521, %v661, 0
        %707 = vmatpush.bf16.xpose.msra.mxu0 0
        %708 = vmatpush.bf16.xpose.msra.mxu0 0
        %709 = vmatpush.bf16.xpose.msra.mxu0 0
        %710 = vmatpush.bf16.xpose.msra.mxu0 0
        %711 = vmatpush.bf16.xpose.msra.mxu0 0
        %712 = vmatpush.bf16.xpose.msra.mxu0 0
        %713 = vmatpush.bf16.xpose.msra.mxu0 0
        %714 = vmatpush.bf16.xpose.msra.mxu0 %v705
        %715 = vmatmul.bf16.gmra.mxu0 %v702
        %v716 = vpop.f32.mrf.mxu0
        %v717 = vadd.f32 0.0, %v716
        %v718 = vpop.f32.mrf.mxu0
        %719 = vdwg.mxu0
        %v721 = vsel %vm521, %v658, 0
        %v724 = vsel %vm521, %v662, 0
        %726 = vmatpush.bf16.xpose.msra.mxu0 0
        %727 = vmatpush.bf16.xpose.msra.mxu0 0
        %728 = vmatpush.bf16.xpose.msra.mxu0 0
        %729 = vmatpush.bf16.xpose.msra.mxu0 0
        %730 = vmatpush.bf16.xpose.msra.mxu0 0
        %731 = vmatpush.bf16.xpose.msra.mxu0 0
        %732 = vmatpush.bf16.xpose.msra.mxu0 0
        %733 = vmatpush.bf16.xpose.msra.mxu0 %v724
        %734 = vmatmul.bf16.gmra.mxu0 %v721
        %v735 = vpop.f32.mrf.mxu0
        %v736 = vadd.f32 0.0, %v735
        %v737 = vpop.f32.mrf.mxu0
        %738 = vdwg.mxu0
        %739 = vxpose.xlu0.b32.start [1/16] %v679, 128
        %740 = vxpose.xlu0.b32.cont [2/16] %v698, 128
        %741 = vxpose.xlu0.b32.cont [3/16] %v717, 128
        %742 = vxpose.xlu0.b32.cont [4/16] %v736, 128
        %743 = vxpose.xlu0.b32.cont [5/16] 0.0, 128
        %744 = vxpose.xlu0.b32.cont [6/16] 0.0, 128
        %745 = vxpose.xlu0.b32.cont [7/16] 0.0, 128
        %746 = vxpose.xlu0.b32.cont [8/16] 0.0, 128
        %747 = vxpose.xlu0.b32.cont [9/16] 0.0, 128
        %748 = vxpose.xlu0.b32.cont [10/16] 0.0, 128
        %749 = vxpose.xlu0.b32.cont [11/16] 0.0, 128
        %750 = vxpose.xlu0.b32.cont [12/16] 0.0, 128
        %751 = vxpose.xlu0.b32.cont [13/16] 0.0, 128
        %752 = vxpose.xlu0.b32.cont [14/16] 0.0, 128
        %753 = vxpose.xlu0.b32.cont [15/16] 0.0, 128
        %754 = vxpose.xlu0.b32.end [16/16] 0.0, 128
        %v755 = vpop.trf.xlu0
        %v756 = vpop.trf.xlu0
        %v757 = vpop.trf.xlu0
        %v758 = vpop.trf.xlu0
        %v759 = vpop.trf.xlu0
        %v760 = vpop.trf.xlu0
        %v761 = vpop.trf.xlu0
        %v762 = vpop.trf.xlu0
        %v763 = vpop.trf.xlu0
        %v764 = vpop.trf.xlu0
        %v765 = vpop.trf.xlu0
        %v766 = vpop.trf.xlu0
        %v767 = vpop.trf.xlu0
        %v768 = vpop.trf.xlu0
        %v769 = vpop.trf.xlu0
        %v770 = vpop.trf.xlu0
        %v771 = vld [vmem:[%s4 + $0x10] sm:$0xf]
        %v772 = vld [vmem:[%s4 + $0x14] sm:$0xf]
        %v773 = vld [vmem:[%s4 + $0x18] sm:$0xf]
        %v774 = vld [vmem:[%s4 + $0x1c] sm:$0xf]
        %v775 = vpack.c.bf16 %v755, %v755
        %v776 = vld [vmem:[%s3 + $0x3] sm:$0x1]
        %v777 = vperm.slane %v776, 0
        %v782 = vunpack.c.l.b16 %v771
        %v783 = vunpack.c.l.b16 %v772
        %v784 = vunpack.c.l.b16 %v773
        %v785 = vunpack.c.l.b16 %v774
        %v786 = vpack.c.b16 %v783, %v782
        %v787 = vpack.c.b16 %v785, %v784
        %v791 = vsel %vm284, %v775, 0
        %793 = vmatpush.bf16.msra.mxu0 0
        %794 = vmatpush.bf16.msra.mxu0 0
        %795 = vmatpush.bf16.msra.mxu0 0
        %796 = vmatpush.bf16.msra.mxu0 0
        %797 = vmatpush.bf16.msra.mxu0 0
        %798 = vmatpush.bf16.msra.mxu0 0
        %799 = vmatpush.bf16.msra.mxu0 %v787
        %800 = vmatpush.bf16.msra.mxu0 %v786
        %801 = vmatmul.bf16.gmra.mxu0 %v791
        %v802 = vpop.f32.mrf.mxu0
        %v803 = vadd.f32 %v777, %v802
        %v804 = vpop.f32.mrf.mxu0
        %805 = vdwg.mxu0
        %v806 = vadd.f32 %v803, %v317
        %v807 = vld [vmem:[%s3 + $0x4] sm:$0x1]
        %v808 = vld [vmem:[%s3 + $0x5] sm:$0x1]
        %v809 = vsel %vm284, %v806, 0.0
        %810 = vadd.xlane.f32.xlu0 %v809
        %v811 = vpop.xlane.xlu0 %810
        %v812 = vmul.f32 %v811, %v294
        %v813 = vsub.f32 %v806, %v812
        %v814 = vmul.f32 %v813, %v813
        %v815 = vsel %vm284, %v814, 0.0
        %816 = vadd.xlane.f32.xlu0 %v815
        %v817 = vpop.xlane.xlu0 %816
        %v818 = vmul.f32 %v817, %v294
        %v819 = vadd.f32 %v818, 1e-12
        %v820 = vrsqrt.pop %v819
        %v821 = vmul.f32 %v820, %v819
        %v822 = vmul.f32 %v821, %v820
        %v823 = vmul.f32 0.5, %v822
        %v824 = vsub.f32 1.5, %v823
        %v825 = vmul.f32 %v820, %v824
        %vm826 = vweird.f32 %v819
        %vm827 = vweird.f32 %v820
        %vm828 = vmor %vm826, %vm827
        %v829 = vsel %vm828, %v820, %v825
        %v830 = vmul.f32 %v813, %v829
        %v831 = vperm.slane %v807, 0
        %v832 = vmul.f32 %v830, %v831
        %v833 = vperm.slane %v808, 0
        %v834 = vadd.f32 %v832, %v833
        %v835 = vld [vmem:[%s4 + $0x20] sm:$0xf]
        %v836 = vld [vmem:[%s4 + $0x24] sm:$0xf]
        %v837 = vld [vmem:[%s4 + $0x28] sm:$0xf]
        %v838 = vld [vmem:[%s4 + $0x2c] sm:$0xf]
        %v839 = vpack.c.bf16 %v834, %v834
        %v840 = vld [vmem:[%s3 + $0x6] sm:$0x1]
        %v841 = vperm.slane %v840, 0
        %v846 = vunpack.c.l.b16 %v835
        %v847 = vunpack.c.l.b16 %v836
        %v848 = vunpack.c.l.b16 %v837
        %v849 = vunpack.c.l.b16 %v838
        %v850 = vpack.c.b16 %v847, %v846
        %v851 = vpack.c.b16 %v849, %v848
        %v855 = vsel %vm284, %v839, 0
        %857 = vmatpush.bf16.msra.mxu0 0
        %858 = vmatpush.bf16.msra.mxu0 0
        %859 = vmatpush.bf16.msra.mxu0 0
        %860 = vmatpush.bf16.msra.mxu0 0
        %861 = vmatpush.bf16.msra.mxu0 0
        %862 = vmatpush.bf16.msra.mxu0 0
        %863 = vmatpush.bf16.msra.mxu0 %v851
        %864 = vmatpush.bf16.msra.mxu0 %v850
        %865 = vmatmul.bf16.gmra.mxu0 %v855
        %v866 = vpop.f32.mrf.mxu0
        %v867 = vadd.f32 %v841, %v866
        %v868 = vpop.f32.mrf.mxu0
        %869 = vdwg.mxu0
        %v870 = vmul.f32 %v867, %v867
        %v871 = vmul.f32 %v867, %v870
        %v872 = vmul.f32 %v871, 0.044715
        %v873 = vadd.f32 %v867, %v872
        %v874 = vmul.f32 %v873, 0.7978846
        %v875 = vtanh.pop %v874
        %v876 = vadd.f32 %v875, 1.0
        %v877 = vmul.f32 %v876, 0.5
        %v878 = vmul.f32 %v867, %v877
        %v879 = vld [vmem:[%s4 + $0x30] sm:$0xf]
        %v880 = vld [vmem:[%s4 + $0x34] sm:$0xf]
        %v881 = vld [vmem:[%s4 + $0x38] sm:$0xf]
        %v882 = vld [vmem:[%s4 + $0x3c] sm:$0xf]
        %v883 = vld [vmem:[%s4 + $0x40] sm:$0xf]
        %v884 = vld [vmem:[%s4 + $0x44] sm:$0xf]
        %v885 = vld [vmem:[%s4 + $0x48] sm:$0xf]
        %v886 = vld [vmem:[%s4 + $0x4c] sm:$0xf]
        %v887 = vpack.c.bf16 %v878, %v878
        %v888 = vld [vmem:[%s3 + $0x7] sm:$0x1]
        %v889 = vperm.slane %v888, 0
        %v898 = vunpack.c.l.b16 %v879
        %v899 = vunpack.c.l.b16 %v880
        %v900 = vunpack.c.l.b16 %v881
        %v901 = vunpack.c.l.b16 %v882
        %v902 = vunpack.c.l.b16 %v883
        %v903 = vunpack.c.l.b16 %v884
        %v904 = vunpack.c.l.b16 %v885
        %v905 = vunpack.c.l.b16 %v886
        %v906 = vpack.c.b16 %v899, %v898
        %v907 = vpack.c.b16 %v901, %v900
        %v908 = vpack.c.b16 %v903, %v902
        %v909 = vpack.c.b16 %v905, %v904
        %vm914 = vcmask 523264
        %v916 = vsel %vm914, %v887, 0
        %918 = vmatpush.bf16.msra.mxu0 0
        %919 = vmatpush.bf16.msra.mxu0 0
        %920 = vmatpush.bf16.msra.mxu0 0
        %921 = vmatpush.bf16.msra.mxu0 0
        %922 = vmatpush.bf16.msra.mxu0 %v909
        %923 = vmatpush.bf16.msra.mxu0 %v908
        %924 = vmatpush.bf16.msra.mxu0 %v907
        %925 = vmatpush.bf16.msra.mxu0 %v906
        %926 = vmatmul.bf16.gmra.mxu0 %v916
        %v927 = vpop.f32.mrf.mxu0
        %v928 = vadd.f32 %v889, %v927
        %v929 = vpop.f32.mrf.mxu0
        %930 = vdwg.mxu0
        %v931 = vadd.f32 %v928, %v834
        %v932 = vld [vmem:[%s3 + $0x8] sm:$0x1]
        %v933 = vld [vmem:[%s3 + $0x9] sm:$0x1]
        %v934 = vsel %vm284, %v931, 0.0
        %935 = vadd.xlane.f32.xlu0 %v934
        %v936 = vpop.xlane.xlu0 %935
        %v937 = vmul.f32 %v936, %v294
        %v938 = vsub.f32 %v931, %v937
        %v939 = vmul.f32 %v938, %v938
        %v940 = vsel %vm284, %v939, 0.0
        %941 = vadd.xlane.f32.xlu0 %v940
        %v942 = vpop.xlane.xlu0 %941
        %v943 = vmul.f32 %v942, %v294
        %v944 = vadd.f32 %v943, 1e-12
        %v945 = vrsqrt.pop %v944
        %v946 = vmul.f32 %v945, %v944
        %v947 = vmul.f32 %v946, %v945
        %v948 = vmul.f32 0.5, %v947
        %v949 = vsub.f32 1.5, %v948
        %v950 = vmul.f32 %v945, %v949
        %vm951 = vweird.f32 %v944
        %vm952 = vweird.f32 %v945
        %vm953 = vmor %vm951, %vm952
        %v954 = vsel %vm953, %v945, %v950
        %v955 = vmul.f32 %v938, %v954
        %v956 = vperm.slane %v932, 0
        %v957 = vmul.f32 %v955, %v956
        %v958 = vperm.slane %v933, 0
        %v959 = vadd.f32 %v957, %v958
        %v960 = vld [vmem:[%s5] sm:$0xff]
        %v961 = vld [vmem:[%s279] sm:$0xf]
        %v962 = vld [vmem:[%s279 + $0x4] sm:$0xf]
        %v963 = vld [vmem:[%s279 + $0x8] sm:$0xf]
        %v964 = vld [vmem:[%s279 + $0xc] sm:$0xf]
        %v965 = vld [vmem:[%s279 + $0x10] sm:$0xf]
        %v966 = vld [vmem:[%s279 + $0x14] sm:$0xf]
        %v967 = vld [vmem:[%s279 + $0x18] sm:$0xf]
        %v968 = vld [vmem:[%s279 + $0x1c] sm:$0xf]
        %v969 = vld [vmem:[%s279 + $0x20] sm:$0xf]
        %v970 = vld [vmem:[%s279 + $0x24] sm:$0xf]
        %v971 = vld [vmem:[%s279 + $0x28] sm:$0xf]
        %v972 = vld [vmem:[%s279 + $0x2c] sm:$0xf]
        %v973 = vld [vmem:[%s279 + $0x30] sm:$0xf]
        %v974 = vld [vmem:[%s279 + $0x34] sm:$0xf]
        %v975 = vld [vmem:[%s279 + $0x38] sm:$0xf]
        %v976 = vld [vmem:[%s279 + $0x3c] sm:$0xf]
        %v977 = vld [vmem:[%s279 + $0x40] sm:$0xf]
        %v978 = vld [vmem:[%s279 + $0x44] sm:$0xf]
        %v979 = vld [vmem:[%s279 + $0x48] sm:$0x3]
        %v981 = vunpack.c.l.b16 %v960
        %v982 = vunpack.c.h.b16 %v960
        %v983 = vpack.c.b16 %v981, %v981
        %v984 = vpack.c.b16 %v982, %v982
        %v1005 = vunpack.c.l.b16 %v961
        %v1006 = vunpack.c.l.b16 %v962
        %v1007 = vunpack.c.l.b16 %v963
        %v1008 = vunpack.c.l.b16 %v964
        %v1009 = vunpack.c.l.b16 %v965
        %v1010 = vunpack.c.l.b16 %v966
        %v1011 = vunpack.c.l.b16 %v967
        %v1012 = vunpack.c.l.b16 %v968
        %v1013 = vunpack.c.l.b16 %v969
        %v1014 = vunpack.c.l.b16 %v970
        %v1015 = vunpack.c.l.b16 %v971
        %v1016 = vunpack.c.l.b16 %v972
        %v1017 = vunpack.c.l.b16 %v973
        %v1018 = vunpack.c.l.b16 %v974
        %v1019 = vunpack.c.l.b16 %v975
        %v1020 = vunpack.c.l.b16 %v976
        %v1021 = vunpack.c.l.b16 %v977
        %v1022 = vunpack.c.l.b16 %v978
        %v1023 = vunpack.c.l.b16 %v979
        %v1024 = vpack.c.b16 %v1006, %v1005
        %v1025 = vpack.c.b16 %v1008, %v1007
        %v1026 = vpack.c.b16 %v1010, %v1009
        %v1027 = vpack.c.b16 %v1012, %v1011
        %v1028 = vpack.c.b16 %v1014, %v1013
        %v1029 = vpack.c.b16 %v1016, %v1015
        %v1030 = vpack.c.b16 %v1018, %v1017
        %v1031 = vpack.c.b16 %v1020, %v1019
        %v1032 = vpack.c.b16 %v1022, %v1021
        %v1033 = vpack.c.b16 %v1023, %v1023
        %vm1043 = vcmask 154624
        %v1045 = vsel %vm1043, %v984, 0
        %vm1047 = vcmask 1040384
        %vm1048 = vcmask 1041408
        %v1049 = vsel %vm1047, 4294967295, 65535
        %v1050 = vsel %vm1048, %v1049, 0
        %v1052 = vand.u32 %v1033, %v1050
        %1054 = vmatpush.bf16.msra.mxu0 %v1031
        %1055 = vmatpush.bf16.msra.mxu0 %v1030
        %1056 = vmatpush.bf16.msra.mxu0 %v1029
        %1057 = vmatpush.bf16.msra.mxu0 %v1028
        %1058 = vmatpush.bf16.msra.mxu0 %v1027
        %1059 = vmatpush.bf16.msra.mxu0 %v1026
        %1060 = vmatpush.bf16.msra.mxu0 %v1025
        %1061 = vmatpush.bf16.msra.mxu0 %v1024
        %1062 = vmatmul.bf16.gmra.mxu0 %v983
        %v1063 = vpop.f32.mrf.mxu0
        %v1064 = vadd.f32 0.0, %v1063
        %v1065 = vpop.f32.mrf.mxu0
        %1066 = vdwg.mxu0
        %1067 = vmatpush.bf16.msra.mxu0 0
        %1068 = vmatpush.bf16.msra.mxu0 0
        %1069 = vmatpush.bf16.msra.mxu0 0
        %1070 = vmatpush.bf16.msra.mxu0 0
        %1071 = vmatpush.bf16.msra.mxu0 0
        %1072 = vmatpush.bf16.msra.mxu0 0
        %1073 = vmatpush.bf16.msra.mxu0 %v1052
        %1074 = vmatpush.bf16.msra.mxu0 %v1032
        %1075 = vmatmul.bf16.gmra.mxu0 %v1045
        %v1076 = vpop.f32.mrf.mxu0
        %v1077 = vadd.f32 %v1064, %v1076
        %v1078 = vpop.f32.mrf.mxu0
        %1079 = vdwg.mxu0
        %v1080 = vmax.f32 %v1077, 0.0
        %v1081 = vsel %vm914, %v1080, 0.0
        %1082 = vadd.xlane.f32.xlu0 %v1081
        %v1083 = vpop.xlane.xlu0 %1082
        %v1084 = vrcp.pop 64.0
        %v1085 = vmul.f32 64.0, %v1084
        %v1086 = vsub.f32 1.0, %v1085
        %v1087 = vmul.f32 %v1084, %v1086
        %v1088 = vadd.f32 %v1084, %v1087
        %vm1089 = vweird.f32 %v1084
        %v1090 = vsel %vm1089, %v1084, %v1088
        %v1091 = vmul.f32 %v1083, %v1090
        %v1092 = vld [vmem:[%s4 + $0x50] sm:$0xf]
        %v1093 = vunpack.c.l.bf16 %v1092
        %v1094 = vmul.f32 %v1091, %v1093
        %v1095 = vsel %vm284, %v1094, 0.0
        %v1096 = vrot.slane %v1095, 4
        %v1097 = vadd.f32 %v1095, %v1096
        %v1098 = vrot.slane %v1097, 2
        %v1099 = vadd.f32 %v1097, %v1098
        %v1100 = vrot.slane %v1099, 1
        %v1101 = vadd.f32 %v1099, %v1100
        %v1102 = vld [vmem:[%s3 + $0xa] sm:$0x1]
        %v1103 = vadd.f32 %v1101, %v1102
        %v1104 = vadd.f32 %v959, %v1103
        %v1105 = vld [vmem:[%s4 + $0x58] sm:$0xf]
        %v1106 = vld [vmem:[%s4 + $0x5c] sm:$0xf]
        %v1107 = vld [vmem:[%s4 + $0x60] sm:$0xf]
        %v1108 = vld [vmem:[%s4 + $0x64] sm:$0xf]
        %v1109 = vpack.c.bf16 %v1104, %v1104
        %v1110 = vld [vmem:[%s3 + $0xb] sm:$0x1]
        %v1115 = vunpack.c.l.b16 %v1105
        %v1116 = vunpack.c.l.b16 %v1106
        %v1117 = vunpack.c.l.b16 %v1107
        %v1118 = vunpack.c.l.b16 %v1108
        %v1119 = vpack.c.b16 %v1116, %v1115
        %v1120 = vpack.c.b16 %v1118, %v1117
        %v1124 = vsel %vm284, %v1109, 0
        %1126 = vmatpush.bf16.msra.mxu0 0
        %1127 = vmatpush.bf16.msra.mxu0 0
        %1128 = vmatpush.bf16.msra.mxu0 0
        %1129 = vmatpush.bf16.msra.mxu0 0
        %1130 = vmatpush.bf16.msra.mxu0 0
        %1131 = vmatpush.bf16.msra.mxu0 0
        %1132 = vmatpush.bf16.msra.mxu0 %v1120
        %1133 = vmatpush.bf16.msra.mxu0 %v1119
        %1134 = vmatmul.bf16.gmra.mxu0 %v1124
        %v1135 = vpop.f32.mrf.mxu0
        %v1136 = vadd.f32 %v1110, %v1135
        %v1137 = vpop.f32.mrf.mxu0
        %1138 = vdwg.mxu0
        %vm1139 = vcmask 8192
        %1140 = vst.msk [vmem:[%s267] sm:$0x1] %vm1139, %v1136
        %s1141 = sand.u32 %s169, 1
        %s1142 = scalar_lea.sflag [#allocation3], %s1141
        %s1143 = sand.u32 %s169, 1
        %s1144 = scalar_lea.vmem [#allocation2], %s1143
        // Predicated region
        $region45: #{forward.1} parent=43 // pred_check
          %p1145 = pneg %p179
        $region46: #{forward.1} parent=43 // pred_check_branch
          %1147 = sbr.rel (%p1145) target = $region48
        $region47: #{forward.1} parent=43 // pred_region
          %1149 = vsyncadd %s1142, 0
          %s1150 = scalar_lea.hbm %s6, %s20
          %s1152 = sshll.u32 %s1144, 4
          %s1153 = int_to_ptr.vmem [resolvable:$true] %s1152
          %s1154 = sshll.u32 %s1150, 4
          %s1155 = int_to_ptr.hbm [resolvable:$true] %s1154
          %1157 = dma.vmem_to_hbm [thread:$0]  %s1153, 16, %s1155, %s1142
        $region48: #{forward.1} parent=43 // pred_fallthru
          _
      $region44: #{forward.1} parent=5 // pred_fallthru
        _
      %p1158 = scmp.le.s32.totalorder 2, %s15
      // Predicated region
      $region49: #{forward.1} parent=5 // pred_check
        %p1159 = pneg %p1158
      $region50: #{forward.1} parent=5 // pred_check_branch
        %1161 = sbr.rel (%p1159) target = $region52
      $region51: #{forward.1} parent=5 // pred_region
        %s1162 = ssub.s32 %s15, 2
        // Predicated region
        $region53: #{forward.1} parent=51 // pred_check
          %p1163 = pneg %p185
        $region54: #{forward.1} parent=51 // pred_check_branch
          %1165 = sbr.rel (%p1163) target = $region56
        $region55: #{forward.1} parent=51 // pred_region
          %s1166 = sand.u32 %s170, 1
          %s1167 = scalar_lea.sflag [#allocation3], %s1166
          %s1168 = sand.u32 %s170, 1
          %s1169 = scalar_lea.vmem [#allocation2], %s1168
          %1171 = dma.done %s1167, 16
        $region56: #{forward.1} parent=51 // pred_fallthru
          _
      $region52: #{forward.1} parent=5 // pred_fallthru
        _
    $region6: #{forward.1} parent=1 // loop_footer
      %s19 = sadd.s32 1, %s15
    $region7: #{forward.1} parent=1 // loop_footer_branch
      %14 = sbr.rel target = $region3
    $region8: #{forward.1} parent=1 // loop_exit
      _
    %1172 = vsyncpa [#allocation3], 1
    %s1173 = scalar_lea.sflag [#allocation3], 1
    %1174 = vsyncpa %s1173, 1

</llo_original>
